<compile_context>
chip_gen: v7x
topology: tpu7x:2x2x1
jax: 0.10.0
libtpu: 0.0.40
codegen_flags: <defaults>
</compile_context>

<pallas_src>
import jax
import jax.numpy as jnp
from jax import lax
from jax.experimental import pallas as pl
from jax.experimental.pallas import tpu as pltpu  # noqa: F401  (kept for TPU-specific tuning hooks)


# ----------------------------------------------------------------------------
# Kernel: full GRU encode in one invocation.
#   prologue : batched input-side gate matmuls over all S*B rows (off the chain)
#   loop     : statically unrolled recurrence; only h @ W_hh_{r,z,n} is serial
#   epilogue : single final-hidden write
# PyTorch nn.GRU gate order is (r, z, n); weights are passed pre-transposed.
# ----------------------------------------------------------------------------
def _gru_encode_kernel(x_ref,                                  # (S*B, H) time-major flattened inputs
                       wih_r_ref, wih_z_ref, wih_n_ref,        # (H, H) each
                       whh_r_ref, whh_z_ref, whh_n_ref,        # (H, H) each
                       b_r_ref, b_z_ref, b_in_ref, b_hn_ref,   # (1, H) each
                       h0_ref,                                 # (B, H)
                       out_ref,                                # (S*B, H) time-major flattened outputs
                       hN_ref):                                # (B, H) final hidden state
    B, _ = hN_ref.shape
    S = out_ref.shape[0] // B

    x = x_ref[...]

    # Hoisted input-side gate matmuls: one (S*B, H) @ (H, H) per gate covering
    # every time step at once.  These never touch the serial h-dependency chain.
    gi_r = jnp.dot(x, wih_r_ref[...], preferred_element_type=jnp.float32) + b_r_ref[...]
    gi_z = jnp.dot(x, wih_z_ref[...], preferred_element_type=jnp.float32) + b_z_ref[...]
    gi_n = jnp.dot(x, wih_n_ref[...], preferred_element_type=jnp.float32) + b_in_ref[...]

    whh_r = whh_r_ref[...]
    whh_z = whh_z_ref[...]
    whh_n = whh_n_ref[...]
    b_hn = b_hn_ref[...]

    h = h0_ref[...]
    # Static unrolled recurrence (S is small & static); gate-aligned operands,
    # no cross-lane slicing in the loop body.
    for t in range(S):
        lo = t * B
        gh_r = jnp.dot(h, whh_r, preferred_element_type=jnp.float32)
        gh_z = jnp.dot(h, whh_z, preferred_element_type=jnp.float32)
        gh_n = jnp.dot(h, whh_n, preferred_element_type=jnp.float32) + b_hn
        r = jax.nn.sigmoid(gi_r[lo:lo + B, :] + gh_r)
        z = jax.nn.sigmoid(gi_z[lo:lo + B, :] + gh_z)
        n = jnp.tanh(gi_n[lo:lo + B, :] + r * gh_n)
        h = (1.0 - z) * n + z * h
        out_ref[pl.ds(lo, B), :] = h          # encoder_outputs at time t

    hN_ref[...] = h                           # single final-hidden-state write


# ----------------------------------------------------------------------------
# Wrapper: EncoderRNN.forward(input_seq, input_lengths, hidden=None)
# ----------------------------------------------------------------------------
def _split_gates(w):
    """PyTorch (3H, H) stacked-gate weight -> three (H, H), pre-transposed for x @ W."""
    H = w.shape[1]
    return w[:H].T, w[H:2 * H].T, w[2 * H:].T


def encoder_rnn_forward(input_seq, input_lengths, params, hidden=None):
    """embedding -> 1-layer GRU (batch_first). input_lengths is accepted but unused,
    exactly as in the PyTorch forward (no packing in this configuration)."""
    del input_lengths
    B, S = input_seq.shape
    H = params["embedding"].shape[1]

    # Embedding row-gather (JAX glue, not a Pallas kernel).
    embedded = jnp.take(params["embedding"], input_seq, axis=0)        # (B, S, H)
    x2d = jnp.transpose(embedded, (1, 0, 2)).reshape(S * B, H)         # time-major, flattened

    h0 = jnp.zeros((B, H), jnp.float32) if hidden is None else hidden[0]

    # Pre-split GRU parameters per gate (r, z, n); fold the biases that only
    # ever appear summed (b_ir+b_hr, b_iz+b_hz).
    wih_r, wih_z, wih_n = _split_gates(params["w_ih"])
    whh_r, whh_z, whh_n = _split_gates(params["w_hh"])
    b_ih, b_hh = params["b_ih"], params["b_hh"]
    b_r = (b_ih[:H] + b_hh[:H]).reshape(1, H)
    b_z = (b_ih[H:2 * H] + b_hh[H:2 * H]).reshape(1, H)
    b_in = b_ih[2 * H:].reshape(1, H)
    b_hn = b_hh[2 * H:].reshape(1, H)

    out2d, hN = pl.pallas_call(
        _gru_encode_kernel,
        out_shape=[
            jax.ShapeDtypeStruct((S * B, H), jnp.float32),
            jax.ShapeDtypeStruct((B, H), jnp.float32),
        ],
    )(x2d, wih_r, wih_z, wih_n, whh_r, whh_z, whh_n,
      b_r, b_z, b_in, b_hn, h0)

    outputs = jnp.transpose(out2d.reshape(S, B, H), (1, 0, 2))         # (B, S, H)
    return outputs, hN[None]                                           # (1, B, H)


# ----------------------------------------------------------------------------
# Pure-JAX reference for verification.
# ----------------------------------------------------------------------------
def encoder_rnn_reference(input_seq, params, hidden=None):
    B, S = input_seq.shape
    H = params["embedding"].shape[1]
    emb = jnp.take(params["embedding"], input_seq, axis=0)
    wih_t = params["w_ih"].T
    whh_t = params["w_hh"].T
    b_ih, b_hh = params["b_ih"], params["b_hh"]
    h0 = jnp.zeros((B, H), jnp.float32) if hidden is None else hidden[0]

    def step(h, xt):
        gi = xt @ wih_t + b_ih
        gh = h @ whh_t + b_hh
        r = jax.nn.sigmoid(gi[:, :H] + gh[:, :H])
        z = jax.nn.sigmoid(gi[:, H:2 * H] + gh[:, H:2 * H])
        n = jnp.tanh(gi[:, 2 * H:] + r * gh[:, 2 * H:])
        hn = (1.0 - z) * n + z * h
        return hn, hn

    hN, out = lax.scan(step, h0, jnp.transpose(emb, (1, 0, 2)))
    return jnp.transpose(out, (1, 0, 2)), hN[None]


if __name__ == "__main__":
    B, S, H = 2, 8, 32
    vocab = 10

    key = jax.random.PRNGKey(0)
    ks = jax.random.split(key, 6)
    params = {
        "embedding": 0.1 * jax.random.normal(ks[0], (vocab, H), jnp.float32),
        # PyTorch-layout GRU weights: rows stacked per gate (r, z, n).
        "w_ih": 0.1 * jax.random.normal(ks[1], (3 * H, H), jnp.float32),
        "w_hh": 0.1 * jax.random.normal(ks[2], (3 * H, H), jnp.float32),
        "b_ih": 0.1 * jax.random.normal(ks[3], (3 * H,), jnp.float32),
        "b_hh": 0.1 * jax.random.normal(ks[4], (3 * H,), jnp.float32),
    }
    input_seq = jax.random.randint(ks[5], (B, S), 0, vocab)
    input_lengths = jnp.full((B,), S, jnp.int32)   # unused by the forward, as in PyTorch

    outputs, hidden = encoder_rnn_forward(input_seq, input_lengths, params)
    jax.block_until_ready((outputs, hidden))

    ref_out, ref_hidden = encoder_rnn_reference(input_seq, params)
    assert outputs.shape == (B, S, H) and hidden.shape == (1, B, H)
    assert jnp.allclose(outputs, ref_out, atol=1e-4, rtol=1e-4)
    assert jnp.allclose(hidden, ref_hidden, atol=1e-4, rtol=1e-4)

    print("KERNEL_OK")
</pallas_src>

<mosaic_0001>
module attributes {stable_mosaic.version = 11 : i64} {
  func.func @_gru_encode_kernel(%arg0: memref<16x32xf32, #tpu.memory_space<vmem>>, %arg1: memref<32x32xf32, #tpu.memory_space<vmem>>, %arg2: memref<32x32xf32, #tpu.memory_space<vmem>>, %arg3: memref<32x32xf32, #tpu.memory_space<vmem>>, %arg4: memref<32x32xf32, #tpu.memory_space<vmem>>, %arg5: memref<32x32xf32, #tpu.memory_space<vmem>>, %arg6: memref<32x32xf32, #tpu.memory_space<vmem>>, %arg7: memref<1x32xf32, #tpu.memory_space<vmem>>, %arg8: memref<1x32xf32, #tpu.memory_space<vmem>>, %arg9: memref<1x32xf32, #tpu.memory_space<vmem>>, %arg10: memref<1x32xf32, #tpu.memory_space<vmem>>, %arg11: memref<2x32xf32, #tpu.memory_space<vmem>>, %arg12: memref<16x32xf32, #tpu.memory_space<vmem>>, %arg13: memref<2x32xf32, #tpu.memory_space<vmem>>) attributes {dimension_semantics = [], scalar_prefetch = 0 : i64, scratch_operands = 0 : i64, tpu.core_type = #tpu.core_type<tc>} {
    %c0 = arith.constant 0 : index
    %c0_0 = arith.constant 0 : index
    %0 = vector.load %arg0[%c0, %c0_0] : memref<16x32xf32, #tpu.memory_space<vmem>>, vector<16x32xf32>
    %c0_1 = arith.constant 0 : index
    %c0_2 = arith.constant 0 : index
    %1 = vector.load %arg1[%c0_1, %c0_2] : memref<32x32xf32, #tpu.memory_space<vmem>>, vector<32x32xf32>
    %cst = arith.constant dense<0.000000e+00> : vector<16x32xf32>
    %2 = tpu.matmul %0, %1, %cst {dimension_numbers = #tpu.dot_dimension_numbers<[1], [0], [0], [1], [0, 0, 1, 1], [], []>} : vector<16x32xf32>, vector<32x32xf32>, vector<16x32xf32> -> vector<16x32xf32>
    %c0_3 = arith.constant 0 : index
    %c0_4 = arith.constant 0 : index
    %3 = vector.load %arg7[%c0_3, %c0_4] : memref<1x32xf32, #tpu.memory_space<vmem>>, vector<1x32xf32>
    %4 = vector.broadcast %3 : vector<1x32xf32> to vector<16x32xf32>
    %5 = arith.addf %2, %4 : vector<16x32xf32>
    %c0_5 = arith.constant 0 : index
    %c0_6 = arith.constant 0 : index
    %6 = vector.load %arg2[%c0_5, %c0_6] : memref<32x32xf32, #tpu.memory_space<vmem>>, vector<32x32xf32>
    %cst_7 = arith.constant dense<0.000000e+00> : vector<16x32xf32>
    %7 = tpu.matmul %0, %6, %cst_7 {dimension_numbers = #tpu.dot_dimension_numbers<[1], [0], [0], [1], [0, 0, 1, 1], [], []>} : vector<16x32xf32>, vector<32x32xf32>, vector<16x32xf32> -> vector<16x32xf32>
    %c0_8 = arith.constant 0 : index
    %c0_9 = arith.constant 0 : index
    %8 = vector.load %arg8[%c0_8, %c0_9] : memref<1x32xf32, #tpu.memory_space<vmem>>, vector<1x32xf32>
    %9 = vector.broadcast %8 : vector<1x32xf32> to vector<16x32xf32>
    %10 = arith.addf %7, %9 : vector<16x32xf32>
    %c0_10 = arith.constant 0 : index
    %c0_11 = arith.constant 0 : index
    %11 = vector.load %arg3[%c0_10, %c0_11] : memref<32x32xf32, #tpu.memory_space<vmem>>, vector<32x32xf32>
    %cst_12 = arith.constant dense<0.000000e+00> : vector<16x32xf32>
    %12 = tpu.matmul %0, %11, %cst_12 {dimension_numbers = #tpu.dot_dimension_numbers<[1], [0], [0], [1], [0, 0, 1, 1], [], []>} : vector<16x32xf32>, vector<32x32xf32>, vector<16x32xf32> -> vector<16x32xf32>
    %c0_13 = arith.constant 0 : index
    %c0_14 = arith.constant 0 : index
    %13 = vector.load %arg9[%c0_13, %c0_14] : memref<1x32xf32, #tpu.memory_space<vmem>>, vector<1x32xf32>
    %14 = vector.broadcast %13 : vector<1x32xf32> to vector<16x32xf32>
    %15 = arith.addf %12, %14 : vector<16x32xf32>
    %c0_15 = arith.constant 0 : index
    %c0_16 = arith.constant 0 : index
    %16 = vector.load %arg4[%c0_15, %c0_16] : memref<32x32xf32, #tpu.memory_space<vmem>>, vector<32x32xf32>
    %c0_17 = arith.constant 0 : index
    %c0_18 = arith.constant 0 : index
    %17 = vector.load %arg5[%c0_17, %c0_18] : memref<32x32xf32, #tpu.memory_space<vmem>>, vector<32x32xf32>
    %c0_19 = arith.constant 0 : index
    %c0_20 = arith.constant 0 : index
    %18 = vector.load %arg6[%c0_19, %c0_20] : memref<32x32xf32, #tpu.memory_space<vmem>>, vector<32x32xf32>
    %c0_21 = arith.constant 0 : index
    %c0_22 = arith.constant 0 : index
    %19 = vector.load %arg10[%c0_21, %c0_22] : memref<1x32xf32, #tpu.memory_space<vmem>>, vector<1x32xf32>
    %c0_23 = arith.constant 0 : index
    %c0_24 = arith.constant 0 : index
    %20 = vector.load %arg11[%c0_23, %c0_24] : memref<2x32xf32, #tpu.memory_space<vmem>>, vector<2x32xf32>
    %cst_25 = arith.constant dense<0.000000e+00> : vector<2x32xf32>
    %21 = tpu.matmul %20, %16, %cst_25 {dimension_numbers = #tpu.dot_dimension_numbers<[1], [0], [0], [1], [0, 0, 1, 1], [], []>} : vector<2x32xf32>, vector<32x32xf32>, vector<2x32xf32> -> vector<2x32xf32>
    %cst_26 = arith.constant dense<0.000000e+00> : vector<2x32xf32>
    %22 = tpu.matmul %20, %17, %cst_26 {dimension_numbers = #tpu.dot_dimension_numbers<[1], [0], [0], [1], [0, 0, 1, 1], [], []>} : vector<2x32xf32>, vector<32x32xf32>, vector<2x32xf32> -> vector<2x32xf32>
    %cst_27 = arith.constant dense<0.000000e+00> : vector<2x32xf32>
    %23 = tpu.matmul %20, %18, %cst_27 {dimension_numbers = #tpu.dot_dimension_numbers<[1], [0], [0], [1], [0, 0, 1, 1], [], []>} : vector<2x32xf32>, vector<32x32xf32>, vector<2x32xf32> -> vector<2x32xf32>
    %24 = vector.broadcast %19 : vector<1x32xf32> to vector<2x32xf32>
    %25 = arith.addf %23, %24 : vector<2x32xf32>
    %26 = vector.extract_strided_slice %5 {offsets = [0, 0], sizes = [2, 32], strides = [1, 1]} : vector<16x32xf32> to vector<2x32xf32>
    %27 = arith.addf %26, %21 : vector<2x32xf32>
    %28 = arith.negf %27 : vector<2x32xf32>
    %29 = math.exp %28 : vector<2x32xf32>
    %cst_28 = arith.constant 1.000000e+00 : f32
    %30 = vector.broadcast %cst_28 : f32 to vector<2x32xf32>
    %31 = arith.addf %30, %29 : vector<2x32xf32>
    %32 = arith.divf %30, %31 : vector<2x32xf32>
    %33 = vector.extract_strided_slice %10 {offsets = [0, 0], sizes = [2, 32], strides = [1, 1]} : vector<16x32xf32> to vector<2x32xf32>
    %34 = arith.addf %33, %22 : vector<2x32xf32>
    %35 = arith.negf %34 : vector<2x32xf32>
    %36 = math.exp %35 : vector<2x32xf32>
    %cst_29 = arith.constant 1.000000e+00 : f32
    %37 = vector.broadcast %cst_29 : f32 to vector<2x32xf32>
    %38 = arith.addf %37, %36 : vector<2x32xf32>
    %39 = arith.divf %37, %38 : vector<2x32xf32>
    %40 = vector.extract_strided_slice %15 {offsets = [0, 0], sizes = [2, 32], strides = [1, 1]} : vector<16x32xf32> to vector<2x32xf32>
    %41 = arith.mulf %32, %25 : vector<2x32xf32>
    %42 = arith.addf %40, %41 : vector<2x32xf32>
    %43 = math.tanh %42 : vector<2x32xf32>
    %cst_30 = arith.constant 1.000000e+00 : f32
    %44 = vector.broadcast %cst_30 : f32 to vector<2x32xf32>
    %45 = arith.subf %44, %39 : vector<2x32xf32>
    %46 = arith.mulf %45, %43 : vector<2x32xf32>
    %47 = arith.mulf %39, %20 : vector<2x32xf32>
    %48 = arith.addf %46, %47 : vector<2x32xf32>
    %c0_31 = arith.constant 0 : index
    %c0_32 = arith.constant 0 : index
    %49 = vector.load %arg12[%c0_31, %c0_32] : memref<16x32xf32, #tpu.memory_space<vmem>>, vector<2x32xf32>
    tpu.vector_store %arg12[%c0_31, %c0_32], %48 {strides = array<i32>} : memref<16x32xf32, #tpu.memory_space<vmem>>, vector<2x32xf32>,
    %cst_33 = arith.constant dense<0.000000e+00> : vector<2x32xf32>
    %50 = tpu.matmul %48, %16, %cst_33 {dimension_numbers = #tpu.dot_dimension_numbers<[1], [0], [0], [1], [0, 0, 1, 1], [], []>} : vector<2x32xf32>, vector<32x32xf32>, vector<2x32xf32> -> vector<2x32xf32>
    %cst_34 = arith.constant dense<0.000000e+00> : vector<2x32xf32>
    %51 = tpu.matmul %48, %17, %cst_34 {dimension_numbers = #tpu.dot_dimension_numbers<[1], [0], [0], [1], [0, 0, 1, 1], [], []>} : vector<2x32xf32>, vector<32x32xf32>, vector<2x32xf32> -> vector<2x32xf32>
    %cst_35 = arith.constant dense<0.000000e+00> : vector<2x32xf32>
    %52 = tpu.matmul %48, %18, %cst_35 {dimension_numbers = #tpu.dot_dimension_numbers<[1], [0], [0], [1], [0, 0, 1, 1], [], []>} : vector<2x32xf32>, vector<32x32xf32>, vector<2x32xf32> -> vector<2x32xf32>
    %53 = vector.broadcast %19 : vector<1x32xf32> to vector<2x32xf32>
    %54 = arith.addf %52, %53 : vector<2x32xf32>
    %55 = vector.extract_strided_slice %5 {offsets = [2, 0], sizes = [2, 32], strides = [1, 1]} : vector<16x32xf32> to vector<2x32xf32>
    %56 = arith.addf %55, %50 : vector<2x32xf32>
    %57 = arith.negf %56 : vector<2x32xf32>
    %58 = math.exp %57 : vector<2x32xf32>
    %cst_36 = arith.constant 1.000000e+00 : f32
    %59 = vector.broadcast %cst_36 : f32 to vector<2x32xf32>
    %60 = arith.addf %59, %58 : vector<2x32xf32>
    %61 = arith.divf %59, %60 : vector<2x32xf32>
    %62 = vector.extract_strided_slice %10 {offsets = [2, 0], sizes = [2, 32], strides = [1, 1]} : vector<16x32xf32> to vector<2x32xf32>
    %63 = arith.addf %62, %51 : vector<2x32xf32>
    %64 = arith.negf %63 : vector<2x32xf32>
    %65 = math.exp %64 : vector<2x32xf32>
    %cst_37 = arith.constant 1.000000e+00 : f32
    %66 = vector.broadcast %cst_37 : f32 to vector<2x32xf32>
    %67 = arith.addf %66, %65 : vector<2x32xf32>
    %68 = arith.divf %66, %67 : vector<2x32xf32>
    %69 = vector.extract_strided_slice %15 {offsets = [2, 0], sizes = [2, 32], strides = [1, 1]} : vector<16x32xf32> to vector<2x32xf32>
    %70 = arith.mulf %61, %54 : vector<2x32xf32>
    %71 = arith.addf %69, %70 : vector<2x32xf32>
    %72 = math.tanh %71 : vector<2x32xf32>
    %cst_38 = arith.constant 1.000000e+00 : f32
    %73 = vector.broadcast %cst_38 : f32 to vector<2x32xf32>
    %74 = arith.subf %73, %68 : vector<2x32xf32>
    %75 = arith.mulf %74, %72 : vector<2x32xf32>
    %76 = arith.mulf %68, %48 : vector<2x32xf32>
    %77 = arith.addf %75, %76 : vector<2x32xf32>
    %c2 = arith.constant 2 : index
    %c0_39 = arith.constant 0 : index
    %78 = vector.load %arg12[%c2, %c0_39] : memref<16x32xf32, #tpu.memory_space<vmem>>, vector<2x32xf32>
    tpu.vector_store %arg12[%c2, %c0_39], %77 {strides = array<i32>} : memref<16x32xf32, #tpu.memory_space<vmem>>, vector<2x32xf32>,
    %cst_40 = arith.constant dense<0.000000e+00> : vector<2x32xf32>
    %79 = tpu.matmul %77, %16, %cst_40 {dimension_numbers = #tpu.dot_dimension_numbers<[1], [0], [0], [1], [0, 0, 1, 1], [], []>} : vector<2x32xf32>, vector<32x32xf32>, vector<2x32xf32> -> vector<2x32xf32>
    %cst_41 = arith.constant dense<0.000000e+00> : vector<2x32xf32>
    %80 = tpu.matmul %77, %17, %cst_41 {dimension_numbers = #tpu.dot_dimension_numbers<[1], [0], [0], [1], [0, 0, 1, 1], [], []>} : vector<2x32xf32>, vector<32x32xf32>, vector<2x32xf32> -> vector<2x32xf32>
    %cst_42 = arith.constant dense<0.000000e+00> : vector<2x32xf32>
    %81 = tpu.matmul %77, %18, %cst_42 {dimension_numbers = #tpu.dot_dimension_numbers<[1], [0], [0], [1], [0, 0, 1, 1], [], []>} : vector<2x32xf32>, vector<32x32xf32>, vector<2x32xf32> -> vector<2x32xf32>
    %82 = vector.broadcast %19 : vector<1x32xf32> to vector<2x32xf32>
    %83 = arith.addf %81, %82 : vector<2x32xf32>
    %84 = vector.extract_strided_slice %5 {offsets = [4, 0], sizes = [2, 32], strides = [1, 1]} : vector<16x32xf32> to vector<2x32xf32>
    %85 = arith.addf %84, %79 : vector<2x32xf32>
    %86 = arith.negf %85 : vector<2x32xf32>
    %87 = math.exp %86 : vector<2x32xf32>
    %cst_43 = arith.constant 1.000000e+00 : f32
    %88 = vector.broadcast %cst_43 : f32 to vector<2x32xf32>
    %89 = arith.addf %88, %87 : vector<2x32xf32>
    %90 = arith.divf %88, %89 : vector<2x32xf32>
    %91 = vector.extract_strided_slice %10 {offsets = [4, 0], sizes = [2, 32], strides = [1, 1]} : vector<16x32xf32> to vector<2x32xf32>
    %92 = arith.addf %91, %80 : vector<2x32xf32>
    %93 = arith.negf %92 : vector<2x32xf32>
    %94 = math.exp %93 : vector<2x32xf32>
    %cst_44 = arith.constant 1.000000e+00 : f32
    %95 = vector.broadcast %cst_44 : f32 to vector<2x32xf32>
    %96 = arith.addf %95, %94 : vector<2x32xf32>
    %97 = arith.divf %95, %96 : vector<2x32xf32>
    %98 = vector.extract_strided_slice %15 {offsets = [4, 0], sizes = [2, 32], strides = [1, 1]} : vector<16x32xf32> to vector<2x32xf32>
    %99 = arith.mulf %90, %83 : vector<2x32xf32>
    %100 = arith.addf %98, %99 : vector<2x32xf32>
    %101 = math.tanh %100 : vector<2x32xf32>
    %cst_45 = arith.constant 1.000000e+00 : f32
    %102 = vector.broadcast %cst_45 : f32 to vector<2x32xf32>
    %103 = arith.subf %102, %97 : vector<2x32xf32>
    %104 = arith.mulf %103, %101 : vector<2x32xf32>
    %105 = arith.mulf %97, %77 : vector<2x32xf32>
    %106 = arith.addf %104, %105 : vector<2x32xf32>
    %c4 = arith.constant 4 : index
    %c0_46 = arith.constant 0 : index
    %107 = vector.load %arg12[%c4, %c0_46] : memref<16x32xf32, #tpu.memory_space<vmem>>, vector<2x32xf32>
    tpu.vector_store %arg12[%c4, %c0_46], %106 {strides = array<i32>} : memref<16x32xf32, #tpu.memory_space<vmem>>, vector<2x32xf32>,
    %cst_47 = arith.constant dense<0.000000e+00> : vector<2x32xf32>
    %108 = tpu.matmul %106, %16, %cst_47 {dimension_numbers = #tpu.dot_dimension_numbers<[1], [0], [0], [1], [0, 0, 1, 1], [], []>} : vector<2x32xf32>, vector<32x32xf32>, vector<2x32xf32> -> vector<2x32xf32>
    %cst_48 = arith.constant dense<0.000000e+00> : vector<2x32xf32>
    %109 = tpu.matmul %106, %17, %cst_48 {dimension_numbers = #tpu.dot_dimension_numbers<[1], [0], [0], [1], [0, 0, 1, 1], [], []>} : vector<2x32xf32>, vector<32x32xf32>, vector<2x32xf32> -> vector<2x32xf32>
    %cst_49 = arith.constant dense<0.000000e+00> : vector<2x32xf32>
    %110 = tpu.matmul %106, %18, %cst_49 {dimension_numbers = #tpu.dot_dimension_numbers<[1], [0], [0], [1], [0, 0, 1, 1], [], []>} : vector<2x32xf32>, vector<32x32xf32>, vector<2x32xf32> -> vector<2x32xf32>
    %111 = vector.broadcast %19 : vector<1x32xf32> to vector<2x32xf32>
    %112 = arith.addf %110, %111 : vector<2x32xf32>
    %113 = vector.extract_strided_slice %5 {offsets = [6, 0], sizes = [2, 32], strides = [1, 1]} : vector<16x32xf32> to vector<2x32xf32>
    %114 = arith.addf %113, %108 : vector<2x32xf32>
    %115 = arith.negf %114 : vector<2x32xf32>
    %116 = math.exp %115 : vector<2x32xf32>
    %cst_50 = arith.constant 1.000000e+00 : f32
    %117 = vector.broadcast %cst_50 : f32 to vector<2x32xf32>
    %118 = arith.addf %117, %116 : vector<2x32xf32>
    %119 = arith.divf %117, %118 : vector<2x32xf32>
    %120 = vector.extract_strided_slice %10 {offsets = [6, 0], sizes = [2, 32], strides = [1, 1]} : vector<16x32xf32> to vector<2x32xf32>
    %121 = arith.addf %120, %109 : vector<2x32xf32>
    %122 = arith.negf %121 : vector<2x32xf32>
    %123 = math.exp %122 : vector<2x32xf32>
    %cst_51 = arith.constant 1.000000e+00 : f32
    %124 = vector.broadcast %cst_51 : f32 to vector<2x32xf32>
    %125 = arith.addf %124, %123 : vector<2x32xf32>
    %126 = arith.divf %124, %125 : vector<2x32xf32>
    %127 = vector.extract_strided_slice %15 {offsets = [6, 0], sizes = [2, 32], strides = [1, 1]} : vector<16x32xf32> to vector<2x32xf32>
    %128 = arith.mulf %119, %112 : vector<2x32xf32>
    %129 = arith.addf %127, %128 : vector<2x32xf32>
    %130 = math.tanh %129 : vector<2x32xf32>
    %cst_52 = arith.constant 1.000000e+00 : f32
    %131 = vector.broadcast %cst_52 : f32 to vector<2x32xf32>
    %132 = arith.subf %131, %126 : vector<2x32xf32>
    %133 = arith.mulf %132, %130 : vector<2x32xf32>
    %134 = arith.mulf %126, %106 : vector<2x32xf32>
    %135 = arith.addf %133, %134 : vector<2x32xf32>
    %c6 = arith.constant 6 : index
    %c0_53 = arith.constant 0 : index
    %136 = vector.load %arg12[%c6, %c0_53] : memref<16x32xf32, #tpu.memory_space<vmem>>, vector<2x32xf32>
    tpu.vector_store %arg12[%c6, %c0_53], %135 {strides = array<i32>} : memref<16x32xf32, #tpu.memory_space<vmem>>, vector<2x32xf32>,
    %cst_54 = arith.constant dense<0.000000e+00> : vector<2x32xf32>
    %137 = tpu.matmul %135, %16, %cst_54 {dimension_numbers = #tpu.dot_dimension_numbers<[1], [0], [0], [1], [0, 0, 1, 1], [], []>} : vector<2x32xf32>, vector<32x32xf32>, vector<2x32xf32> -> vector<2x32xf32>
    %cst_55 = arith.constant dense<0.000000e+00> : vector<2x32xf32>
    %138 = tpu.matmul %135, %17, %cst_55 {dimension_numbers = #tpu.dot_dimension_numbers<[1], [0], [0], [1], [0, 0, 1, 1], [], []>} : vector<2x32xf32>, vector<32x32xf32>, vector<2x32xf32> -> vector<2x32xf32>
    %cst_56 = arith.constant dense<0.000000e+00> : vector<2x32xf32>
    %139 = tpu.matmul %135, %18, %cst_56 {dimension_numbers = #tpu.dot_dimension_numbers<[1], [0], [0], [1], [0, 0, 1, 1], [], []>} : vector<2x32xf32>, vector<32x32xf32>, vector<2x32xf32> -> vector<2x32xf32>
    %140 = vector.broadcast %19 : vector<1x32xf32> to vector<2x32xf32>
    %141 = arith.addf %139, %140 : vector<2x32xf32>
    %142 = vector.extract_strided_slice %5 {offsets = [8, 0], sizes = [2, 32], strides = [1, 1]} : vector<16x32xf32> to vector<2x32xf32>
    %143 = arith.addf %142, %137 : vector<2x32xf32>
    %144 = arith.negf %143 : vector<2x32xf32>
    %145 = math.exp %144 : vector<2x32xf32>
    %cst_57 = arith.constant 1.000000e+00 : f32
    %146 = vector.broadcast %cst_57 : f32 to vector<2x32xf32>
    %147 = arith.addf %146, %145 : vector<2x32xf32>
    %148 = arith.divf %146, %147 : vector<2x32xf32>
    %149 = vector.extract_strided_slice %10 {offsets = [8, 0], sizes = [2, 32], strides = [1, 1]} : vector<16x32xf32> to vector<2x32xf32>
    %150 = arith.addf %149, %138 : vector<2x32xf32>
    %151 = arith.negf %150 : vector<2x32xf32>
    %152 = math.exp %151 : vector<2x32xf32>
    %cst_58 = arith.constant 1.000000e+00 : f32
    %153 = vector.broadcast %cst_58 : f32 to vector<2x32xf32>
    %154 = arith.addf %153, %152 : vector<2x32xf32>
    %155 = arith.divf %153, %154 : vector<2x32xf32>
    %156 = vector.extract_strided_slice %15 {offsets = [8, 0], sizes = [2, 32], strides = [1, 1]} : vector<16x32xf32> to vector<2x32xf32>
    %157 = arith.mulf %148, %141 : vector<2x32xf32>
    %158 = arith.addf %156, %157 : vector<2x32xf32>
    %159 = math.tanh %158 : vector<2x32xf32>
    %cst_59 = arith.constant 1.000000e+00 : f32
    %160 = vector.broadcast %cst_59 : f32 to vector<2x32xf32>
    %161 = arith.subf %160, %155 : vector<2x32xf32>
    %162 = arith.mulf %161, %159 : vector<2x32xf32>
    %163 = arith.mulf %155, %135 : vector<2x32xf32>
    %164 = arith.addf %162, %163 : vector<2x32xf32>
    %c8 = arith.constant 8 : index
    %c0_60 = arith.constant 0 : index
    %165 = vector.load %arg12[%c8, %c0_60] : memref<16x32xf32, #tpu.memory_space<vmem>>, vector<2x32xf32>
    tpu.vector_store %arg12[%c8, %c0_60], %164 {strides = array<i32>} : memref<16x32xf32, #tpu.memory_space<vmem>>, vector<2x32xf32>,
    %cst_61 = arith.constant dense<0.000000e+00> : vector<2x32xf32>
    %166 = tpu.matmul %164, %16, %cst_61 {dimension_numbers = #tpu.dot_dimension_numbers<[1], [0], [0], [1], [0, 0, 1, 1], [], []>} : vector<2x32xf32>, vector<32x32xf32>, vector<2x32xf32> -> vector<2x32xf32>
    %cst_62 = arith.constant dense<0.000000e+00> : vector<2x32xf32>
    %167 = tpu.matmul %164, %17, %cst_62 {dimension_numbers = #tpu.dot_dimension_numbers<[1], [0], [0], [1], [0, 0, 1, 1], [], []>} : vector<2x32xf32>, vector<32x32xf32>, vector<2x32xf32> -> vector<2x32xf32>
    %cst_63 = arith.constant dense<0.000000e+00> : vector<2x32xf32>
    %168 = tpu.matmul %164, %18, %cst_63 {dimension_numbers = #tpu.dot_dimension_numbers<[1], [0], [0], [1], [0, 0, 1, 1], [], []>} : vector<2x32xf32>, vector<32x32xf32>, vector<2x32xf32> -> vector<2x32xf32>
    %169 = vector.broadcast %19 : vector<1x32xf32> to vector<2x32xf32>
    %170 = arith.addf %168, %169 : vector<2x32xf32>
    %171 = vector.extract_strided_slice %5 {offsets = [10, 0], sizes = [2, 32], strides = [1, 1]} : vector<16x32xf32> to vector<2x32xf32>
    %172 = arith.addf %171, %166 : vector<2x32xf32>
    %173 = arith.negf %172 : vector<2x32xf32>
    %174 = math.exp %173 : vector<2x32xf32>
    %cst_64 = arith.constant 1.000000e+00 : f32
    %175 = vector.broadcast %cst_64 : f32 to vector<2x32xf32>
    %176 = arith.addf %175, %174 : vector<2x32xf32>
    %177 = arith.divf %175, %176 : vector<2x32xf32>
    %178 = vector.extract_strided_slice %10 {offsets = [10, 0], sizes = [2, 32], strides = [1, 1]} : vector<16x32xf32> to vector<2x32xf32>
    %179 = arith.addf %178, %167 : vector<2x32xf32>
    %180 = arith.negf %179 : vector<2x32xf32>
    %181 = math.exp %180 : vector<2x32xf32>
    %cst_65 = arith.constant 1.000000e+00 : f32
    %182 = vector.broadcast %cst_65 : f32 to vector<2x32xf32>
    %183 = arith.addf %182, %181 : vector<2x32xf32>
    %184 = arith.divf %182, %183 : vector<2x32xf32>
    %185 = vector.extract_strided_slice %15 {offsets = [10, 0], sizes = [2, 32], strides = [1, 1]} : vector<16x32xf32> to vector<2x32xf32>
    %186 = arith.mulf %177, %170 : vector<2x32xf32>
    %187 = arith.addf %185, %186 : vector<2x32xf32>
    %188 = math.tanh %187 : vector<2x32xf32>
    %cst_66 = arith.constant 1.000000e+00 : f32
    %189 = vector.broadcast %cst_66 : f32 to vector<2x32xf32>
    %190 = arith.subf %189, %184 : vector<2x32xf32>
    %191 = arith.mulf %190, %188 : vector<2x32xf32>
    %192 = arith.mulf %184, %164 : vector<2x32xf32>
    %193 = arith.addf %191, %192 : vector<2x32xf32>
    %c10 = arith.constant 10 : index
    %c0_67 = arith.constant 0 : index
    %194 = vector.load %arg12[%c10, %c0_67] : memref<16x32xf32, #tpu.memory_space<vmem>>, vector<2x32xf32>
    tpu.vector_store %arg12[%c10, %c0_67], %193 {strides = array<i32>} : memref<16x32xf32, #tpu.memory_space<vmem>>, vector<2x32xf32>,
    %cst_68 = arith.constant dense<0.000000e+00> : vector<2x32xf32>
    %195 = tpu.matmul %193, %16, %cst_68 {dimension_numbers = #tpu.dot_dimension_numbers<[1], [0], [0], [1], [0, 0, 1, 1], [], []>} : vector<2x32xf32>, vector<32x32xf32>, vector<2x32xf32> -> vector<2x32xf32>
    %cst_69 = arith.constant dense<0.000000e+00> : vector<2x32xf32>
    %196 = tpu.matmul %193, %17, %cst_69 {dimension_numbers = #tpu.dot_dimension_numbers<[1], [0], [0], [1], [0, 0, 1, 1], [], []>} : vector<2x32xf32>, vector<32x32xf32>, vector<2x32xf32> -> vector<2x32xf32>
    %cst_70 = arith.constant dense<0.000000e+00> : vector<2x32xf32>
    %197 = tpu.matmul %193, %18, %cst_70 {dimension_numbers = #tpu.dot_dimension_numbers<[1], [0], [0], [1], [0, 0, 1, 1], [], []>} : vector<2x32xf32>, vector<32x32xf32>, vector<2x32xf32> -> vector<2x32xf32>
    %198 = vector.broadcast %19 : vector<1x32xf32> to vector<2x32xf32>
    %199 = arith.addf %197, %198 : vector<2x32xf32>
    %200 = vector.extract_strided_slice %5 {offsets = [12, 0], sizes = [2, 32], strides = [1, 1]} : vector<16x32xf32> to vector<2x32xf32>
    %201 = arith.addf %200, %195 : vector<2x32xf32>
    %202 = arith.negf %201 : vector<2x32xf32>
    %203 = math.exp %202 : vector<2x32xf32>
    %cst_71 = arith.constant 1.000000e+00 : f32
    %204 = vector.broadcast %cst_71 : f32 to vector<2x32xf32>
    %205 = arith.addf %204, %203 : vector<2x32xf32>
    %206 = arith.divf %204, %205 : vector<2x32xf32>
    %207 = vector.extract_strided_slice %10 {offsets = [12, 0], sizes = [2, 32], strides = [1, 1]} : vector<16x32xf32> to vector<2x32xf32>
    %208 = arith.addf %207, %196 : vector<2x32xf32>
    %209 = arith.negf %208 : vector<2x32xf32>
    %210 = math.exp %209 : vector<2x32xf32>
    %cst_72 = arith.constant 1.000000e+00 : f32
    %211 = vector.broadcast %cst_72 : f32 to vector<2x32xf32>
    %212 = arith.addf %211, %210 : vector<2x32xf32>
    %213 = arith.divf %211, %212 : vector<2x32xf32>
    %214 = vector.extract_strided_slice %15 {offsets = [12, 0], sizes = [2, 32], strides = [1, 1]} : vector<16x32xf32> to vector<2x32xf32>
    %215 = arith.mulf %206, %199 : vector<2x32xf32>
    %216 = arith.addf %214, %215 : vector<2x32xf32>
    %217 = math.tanh %216 : vector<2x32xf32>
    %cst_73 = arith.constant 1.000000e+00 : f32
    %218 = vector.broadcast %cst_73 : f32 to vector<2x32xf32>
    %219 = arith.subf %218, %213 : vector<2x32xf32>
    %220 = arith.mulf %219, %217 : vector<2x32xf32>
    %221 = arith.mulf %213, %193 : vector<2x32xf32>
    %222 = arith.addf %220, %221 : vector<2x32xf32>
    %c12 = arith.constant 12 : index
    %c0_74 = arith.constant 0 : index
    %223 = vector.load %arg12[%c12, %c0_74] : memref<16x32xf32, #tpu.memory_space<vmem>>, vector<2x32xf32>
    tpu.vector_store %arg12[%c12, %c0_74], %222 {strides = array<i32>} : memref<16x32xf32, #tpu.memory_space<vmem>>, vector<2x32xf32>,
    %cst_75 = arith.constant dense<0.000000e+00> : vector<2x32xf32>
    %224 = tpu.matmul %222, %16, %cst_75 {dimension_numbers = #tpu.dot_dimension_numbers<[1], [0], [0], [1], [0, 0, 1, 1], [], []>} : vector<2x32xf32>, vector<32x32xf32>, vector<2x32xf32> -> vector<2x32xf32>
    %cst_76 = arith.constant dense<0.000000e+00> : vector<2x32xf32>
    %225 = tpu.matmul %222, %17, %cst_76 {dimension_numbers = #tpu.dot_dimension_numbers<[1], [0], [0], [1], [0, 0, 1, 1], [], []>} : vector<2x32xf32>, vector<32x32xf32>, vector<2x32xf32> -> vector<2x32xf32>
    %cst_77 = arith.constant dense<0.000000e+00> : vector<2x32xf32>
    %226 = tpu.matmul %222, %18, %cst_77 {dimension_numbers = #tpu.dot_dimension_numbers<[1], [0], [0], [1], [0, 0, 1, 1], [], []>} : vector<2x32xf32>, vector<32x32xf32>, vector<2x32xf32> -> vector<2x32xf32>
    %227 = vector.broadcast %19 : vector<1x32xf32> to vector<2x32xf32>
    %228 = arith.addf %226, %227 : vector<2x32xf32>
    %229 = vector.extract_strided_slice %5 {offsets = [14, 0], sizes = [2, 32], strides = [1, 1]} : vector<16x32xf32> to vector<2x32xf32>
    %230 = arith.addf %229, %224 : vector<2x32xf32>
    %231 = arith.negf %230 : vector<2x32xf32>
    %232 = math.exp %231 : vector<2x32xf32>
    %cst_78 = arith.constant 1.000000e+00 : f32
    %233 = vector.broadcast %cst_78 : f32 to vector<2x32xf32>
    %234 = arith.addf %233, %232 : vector<2x32xf32>
    %235 = arith.divf %233, %234 : vector<2x32xf32>
    %236 = vector.extract_strided_slice %10 {offsets = [14, 0], sizes = [2, 32], strides = [1, 1]} : vector<16x32xf32> to vector<2x32xf32>
    %237 = arith.addf %236, %225 : vector<2x32xf32>
    %238 = arith.negf %237 : vector<2x32xf32>
    %239 = math.exp %238 : vector<2x32xf32>
    %cst_79 = arith.constant 1.000000e+00 : f32
    %240 = vector.broadcast %cst_79 : f32 to vector<2x32xf32>
    %241 = arith.addf %240, %239 : vector<2x32xf32>
    %242 = arith.divf %240, %241 : vector<2x32xf32>
    %243 = vector.extract_strided_slice %15 {offsets = [14, 0], sizes = [2, 32], strides = [1, 1]} : vector<16x32xf32> to vector<2x32xf32>
    %244 = arith.mulf %235, %228 : vector<2x32xf32>
    %245 = arith.addf %243, %244 : vector<2x32xf32>
    %246 = math.tanh %245 : vector<2x32xf32>
    %cst_80 = arith.constant 1.000000e+00 : f32
    %247 = vector.broadcast %cst_80 : f32 to vector<2x32xf32>
    %248 = arith.subf %247, %242 : vector<2x32xf32>
    %249 = arith.mulf %248, %246 : vector<2x32xf32>
    %250 = arith.mulf %242, %222 : vector<2x32xf32>
    %251 = arith.addf %249, %250 : vector<2x32xf32>
    %c14 = arith.constant 14 : index
    %c0_81 = arith.constant 0 : index
    %252 = vector.load %arg12[%c14, %c0_81] : memref<16x32xf32, #tpu.memory_space<vmem>>, vector<2x32xf32>
    tpu.vector_store %arg12[%c14, %c0_81], %251 {strides = array<i32>} : memref<16x32xf32, #tpu.memory_space<vmem>>, vector<2x32xf32>,
    %c0_82 = arith.constant 0 : index
    %c0_83 = arith.constant 0 : index
    %253 = vector.load %arg13[%c0_82, %c0_83] : memref<2x32xf32, #tpu.memory_space<vmem>>, vector<2x32xf32>
    tpu.vector_store %arg13[%c0_82, %c0_83], %251 {strides = array<i32>} : memref<2x32xf32, #tpu.memory_space<vmem>>, vector<2x32xf32>,
    return
  }
}

</mosaic_0001>

<llo_original>
// kernel: tpu_custom_call.1
$region0: #{tpu_custom_call.1}
  #allocation0 [shape = 'u32[]', space=smem, size = 0x4, offset = 0x4, fixed_abs, tag = 'smem constant byte address 0x4 - core index']
  #allocation1 [shape = 'u32[144,128]{1,0:T(1,128)}', space=vmem, size = 0x12000, scoped, tag = 'internal scratch']
  %s0 = inlined_call_operand.hbm [shape: f32[16,32], index: 0, kind: input, shape index: {}]
  %s1 = inlined_call_operand.hbm [shape: f32[32,32], index: 1, kind: input, shape index: {}]
  %s2 = inlined_call_operand.hbm [shape: f32[32,32], index: 2, kind: input, shape index: {}]
  %s3 = inlined_call_operand.hbm [shape: f32[32,32], index: 3, kind: input, shape index: {}]
  %s4 = inlined_call_operand.hbm [shape: f32[32,32], index: 4, kind: input, shape index: {}]
  %s5 = inlined_call_operand.hbm [shape: f32[32,32], index: 5, kind: input, shape index: {}]
  %s6 = inlined_call_operand.hbm [shape: f32[32,32], index: 6, kind: input, shape index: {}]
  %s7 = inlined_call_operand.vmem [shape: f32[1,32], index: 7, kind: input, shape index: {}]
  %s8 = inlined_call_operand.vmem [shape: f32[1,32], index: 8, kind: input, shape index: {}]
  %s9 = inlined_call_operand.vmem [shape: f32[1,32], index: 9, kind: input, shape index: {}]
  %s10 = inlined_call_operand.vmem [shape: f32[1,32], index: 10, kind: input, shape index: {}]
  %s11 = inlined_call_operand.vmem [shape: f32[2,32], index: 11, kind: input, shape index: {}]
  %s12 = inlined_call_operand.hbm [shape: f32[16,32], index: 12, kind: output, shape index: {0}]
  %s13 = inlined_call_operand.hbm [shape: f32[2,32], index: 13, kind: output, shape index: {1}]
  %14 = xla_tuple %s12, %s13
  %s15 = sld [smem:[#allocation0]]
  $region94: #{tpu_custom_call.1} parent=0
    _
  %s17 = ssub.s32 1, %s15
  %s18 = scalar_select 0, %s17, %s15
  $region1: #{tpu_custom_call.1} parent=0
    #allocation2 [shape = 'u8[8192]{0}', space=vmem, size = 0x2000, scoped, tag = 'input window, operand 0, single buffered']
    #allocation3 [shape = 's32[1]{0}', space=sflag, size = 0x4, scoped, tag = 'scoped memory for tpu_custom_call.1']
    #allocation4 [shape = 's32[1]{0}', space=sflag, size = 0x4, scoped, tag = 'scoped memory for tpu_custom_call.1']
    #allocation5 [shape = 'u8[16384]{0}', space=vmem, size = 0x4000, scoped, tag = 'input window, operand 1, single buffered']
    #allocation6 [shape = 's32[1]{0}', space=sflag, size = 0x4, scoped, tag = 'scoped memory for tpu_custom_call.1']
    #allocation7 [shape = 'u8[16384]{0}', space=vmem, size = 0x4000, scoped, tag = 'input window, operand 2, single buffered']
    #allocation8 [shape = 'u8[16384]{0}', space=vmem, size = 0x4000, scoped, tag = 'input window, operand 3, single buffered']
    #allocation9 [shape = 's32[1]{0}', space=sflag, size = 0x4, scoped, tag = 'scoped memory for tpu_custom_call.1']
    #allocation10 [shape = 'u8[16384]{0}', space=vmem, size = 0x4000, scoped, tag = 'input window, operand 4, single buffered']
    #allocation11 [shape = 'u8[16384]{0}', space=vmem, size = 0x4000, scoped, tag = 'input window, operand 5, single buffered']
    #allocation12 [shape = 's32[1]{0}', space=sflag, size = 0x4, scoped, tag = 'scoped memory for tpu_custom_call.1']
    #allocation13 [shape = 'u8[16384]{0}', space=vmem, size = 0x4000, scoped, tag = 'input window, operand 6, single buffered']
    #allocation14 [shape = 'u8[8192]{0}', space=vmem, size = 0x2000, scoped, tag = 'output window, operand 0, single buffered']
    #allocation15 [shape = 'u8[1024]{0}', space=vmem, size = 0x400, scoped, tag = 'output window, operand 1, single buffered']
    #allocation16 [shape = 's32[1]{0}', space=sflag, size = 0x4, scoped, tag = 'scoped memory for tpu_custom_call.1']
    %19 = vsyncpa [#allocation3], 0
    %20 = vsyncpa [#allocation6], 0
    %21 = vsyncpa [#allocation9], 0
    %22 = vsyncpa [#allocation12], 0
    %23 = vsyncpa [#allocation4], 0
    %24 = vsyncpa [#allocation16], 0
    // Predicated region
    $region2: #{tpu_custom_call.1} parent=1 // pred_check
      _
    $region3: #{tpu_custom_call.1} parent=1 // pred_check_branch
      %26 = sbr.rel (0) target = $region5
    $region4: #{tpu_custom_call.1} parent=1 // pred_region
      %s28 = ssub.s32 256, 256
      %29 = vsyncadd [#allocation3], %s28
      %s30 = sshll.u32 [#allocation2], 4
      %s31 = int_to_ptr.vmem [resolvable:$true] %s30
      %36 = dma.hbm_to_vmem [thread:$0]  %s0, 256, %s31, [#allocation3], 128, 128, 8
    $region5: #{tpu_custom_call.1} parent=1 // pred_fallthru
      _
    // Predicated region
    $region6: #{tpu_custom_call.1} parent=1 // pred_check
      _
    $region7: #{tpu_custom_call.1} parent=1 // pred_check_branch
      %38 = sbr.rel (0) target = $region9
    $region8: #{tpu_custom_call.1} parent=1 // pred_region
      %s40 = ssub.s32 512, 512
      %41 = vsyncadd [#allocation6], %s40
      %s42 = sshll.u32 [#allocation5], 4
      %s43 = int_to_ptr.vmem [resolvable:$true] %s42
      %48 = dma.hbm_to_vmem [thread:$0]  %s1, 512, %s43, [#allocation6], 128, 128, 8
    $region9: #{tpu_custom_call.1} parent=1 // pred_fallthru
      _
    // Predicated region
    $region10: #{tpu_custom_call.1} parent=1 // pred_check
      _
    $region11: #{tpu_custom_call.1} parent=1 // pred_check_branch
      %50 = sbr.rel (0) target = $region13
    $region12: #{tpu_custom_call.1} parent=1 // pred_region
      %s52 = ssub.s32 512, 512
      %53 = vsyncadd [#allocation6], %s52
      %s54 = sshll.u32 [#allocation7], 4
      %s55 = int_to_ptr.vmem [resolvable:$true] %s54
      %60 = dma.hbm_to_vmem [thread:$0]  %s2, 512, %s55, [#allocation6], 128, 128, 8
    $region13: #{tpu_custom_call.1} parent=1 // pred_fallthru
      _
    // Predicated region
    $region14: #{tpu_custom_call.1} parent=1 // pred_check
      _
    $region15: #{tpu_custom_call.1} parent=1 // pred_check_branch
      %62 = sbr.rel (0) target = $region17
    $region16: #{tpu_custom_call.1} parent=1 // pred_region
      %s64 = ssub.s32 512, 512
      %65 = vsyncadd [#allocation9], %s64
      %s66 = sshll.u32 [#allocation8], 4
      %s67 = int_to_ptr.vmem [resolvable:$true] %s66
      %72 = dma.hbm_to_vmem [thread:$0]  %s3, 512, %s67, [#allocation9], 128, 128, 8
    $region17: #{tpu_custom_call.1} parent=1 // pred_fallthru
      _
    // Predicated region
    $region18: #{tpu_custom_call.1} parent=1 // pred_check
      _
    $region19: #{tpu_custom_call.1} parent=1 // pred_check_branch
      %74 = sbr.rel (0) target = $region21
    $region20: #{tpu_custom_call.1} parent=1 // pred_region
      %s76 = ssub.s32 512, 512
      %77 = vsyncadd [#allocation9], %s76
      %s78 = sshll.u32 [#allocation10], 4
      %s79 = int_to_ptr.vmem [resolvable:$true] %s78
      %84 = dma.hbm_to_vmem [thread:$0]  %s4, 512, %s79, [#allocation9], 128, 128, 8
    $region21: #{tpu_custom_call.1} parent=1 // pred_fallthru
      _
    // Predicated region
    $region22: #{tpu_custom_call.1} parent=1 // pred_check
      _
    $region23: #{tpu_custom_call.1} parent=1 // pred_check_branch
      %86 = sbr.rel (0) target = $region25
    $region24: #{tpu_custom_call.1} parent=1 // pred_region
      %s88 = ssub.s32 512, 512
      %89 = vsyncadd [#allocation12], %s88
      %s90 = sshll.u32 [#allocation11], 4
      %s91 = int_to_ptr.vmem [resolvable:$true] %s90
      %96 = dma.hbm_to_vmem [thread:$0]  %s5, 512, %s91, [#allocation12], 128, 128, 8
    $region25: #{tpu_custom_call.1} parent=1 // pred_fallthru
      _
    // Predicated region
    $region26: #{tpu_custom_call.1} parent=1 // pred_check
      _
    $region27: #{tpu_custom_call.1} parent=1 // pred_check_branch
      %98 = sbr.rel (0) target = $region29
    $region28: #{tpu_custom_call.1} parent=1 // pred_region
      %s100 = ssub.s32 512, 512
      %101 = vsyncadd [#allocation12], %s100
      %s102 = sshll.u32 [#allocation13], 4
      %s103 = int_to_ptr.vmem [resolvable:$true] %s102
      %108 = dma.hbm_to_vmem [thread:$0]  %s6, 512, %s103, [#allocation12], 128, 128, 8
    $region29: #{tpu_custom_call.1} parent=1 // pred_fallthru
      _
    // Predicated region
    $region30: #{tpu_custom_call.1} parent=1 // pred_check
      _
    $region31: #{tpu_custom_call.1} parent=1 // pred_check_branch
      %110 = sbr.rel (0) target = $region33
    $region32: #{tpu_custom_call.1} parent=1 // pred_region
      _
    $region33: #{tpu_custom_call.1} parent=1 // pred_fallthru
      _
    // Predicated region
    $region34: #{tpu_custom_call.1} parent=1 // pred_check
      _
    $region35: #{tpu_custom_call.1} parent=1 // pred_check_branch
      %112 = sbr.rel (0) target = $region37
    $region36: #{tpu_custom_call.1} parent=1 // pred_region
      _
    $region37: #{tpu_custom_call.1} parent=1 // pred_fallthru
      _
    // Predicated region
    $region38: #{tpu_custom_call.1} parent=1 // pred_check
      _
    $region39: #{tpu_custom_call.1} parent=1 // pred_check_branch
      %114 = sbr.rel (0) target = $region41
    $region40: #{tpu_custom_call.1} parent=1 // pred_region
      _
    $region41: #{tpu_custom_call.1} parent=1 // pred_fallthru
      _
    // Predicated region
    $region42: #{tpu_custom_call.1} parent=1 // pred_check
      _
    $region43: #{tpu_custom_call.1} parent=1 // pred_check_branch
      %116 = sbr.rel (0) target = $region45
    $region44: #{tpu_custom_call.1} parent=1 // pred_region
      _
    $region45: #{tpu_custom_call.1} parent=1 // pred_fallthru
      _
    // Predicated region
    $region46: #{tpu_custom_call.1} parent=1 // pred_check
      _
    $region47: #{tpu_custom_call.1} parent=1 // pred_check_branch
      %118 = sbr.rel (0) target = $region49
    $region48: #{tpu_custom_call.1} parent=1 // pred_region
      _
    $region49: #{tpu_custom_call.1} parent=1 // pred_fallthru
      _
    // Predicated region
    $region50: #{tpu_custom_call.1} parent=1 // pred_check
      _
    $region51: #{tpu_custom_call.1} parent=1 // pred_check_branch
      %120 = sbr.rel (0) target = $region53
    $region52: #{tpu_custom_call.1} parent=1 // pred_region
      %121 = dma.done [#allocation3], 256
    $region53: #{tpu_custom_call.1} parent=1 // pred_fallthru
      _
    // Predicated region
    $region54: #{tpu_custom_call.1} parent=1 // pred_check
      _
    $region55: #{tpu_custom_call.1} parent=1 // pred_check_branch
      %123 = sbr.rel (0) target = $region57
    $region56: #{tpu_custom_call.1} parent=1 // pred_region
      %124 = dma.done [#allocation6], 512
    $region57: #{tpu_custom_call.1} parent=1 // pred_fallthru
      _
    // Predicated region
    $region58: #{tpu_custom_call.1} parent=1 // pred_check
      _
    $region59: #{tpu_custom_call.1} parent=1 // pred_check_branch
      %126 = sbr.rel (0) target = $region61
    $region60: #{tpu_custom_call.1} parent=1 // pred_region
      %127 = dma.done [#allocation6], 512
    $region61: #{tpu_custom_call.1} parent=1 // pred_fallthru
      _
    // Predicated region
    $region62: #{tpu_custom_call.1} parent=1 // pred_check
      _
    $region63: #{tpu_custom_call.1} parent=1 // pred_check_branch
      %129 = sbr.rel (0) target = $region65
    $region64: #{tpu_custom_call.1} parent=1 // pred_region
      %130 = dma.done [#allocation9], 512
    $region65: #{tpu_custom_call.1} parent=1 // pred_fallthru
      _
    // Predicated region
    $region66: #{tpu_custom_call.1} parent=1 // pred_check
      _
    $region67: #{tpu_custom_call.1} parent=1 // pred_check_branch
      %132 = sbr.rel (0) target = $region69
    $region68: #{tpu_custom_call.1} parent=1 // pred_region
      %133 = dma.done [#allocation9], 512
    $region69: #{tpu_custom_call.1} parent=1 // pred_fallthru
      _
    // Predicated region
    $region70: #{tpu_custom_call.1} parent=1 // pred_check
      _
    $region71: #{tpu_custom_call.1} parent=1 // pred_check_branch
      %135 = sbr.rel (0) target = $region73
    $region72: #{tpu_custom_call.1} parent=1 // pred_region
      %136 = dma.done [#allocation12], 512
    $region73: #{tpu_custom_call.1} parent=1 // pred_fallthru
      _
    // Predicated region
    $region74: #{tpu_custom_call.1} parent=1 // pred_check
      _
    $region75: #{tpu_custom_call.1} parent=1 // pred_check_branch
      %138 = sbr.rel (0) target = $region77
    $region76: #{tpu_custom_call.1} parent=1 // pred_region
      %139 = dma.done [#allocation12], 512
    $region77: #{tpu_custom_call.1} parent=1 // pred_fallthru
      _
    %v140 = vld [vmem:[#allocation2] sm:$0xff]
    %v141 = vld [vmem:[#allocation2 + $0x8] sm:$0xff]
    %v142 = vld [vmem:[#allocation5] sm:$0xff]
    %v143 = vld [vmem:[#allocation5 + $0x8] sm:$0xff]
    %v144 = vld [vmem:[#allocation5 + $0x10] sm:$0xff]
    %v145 = vld [vmem:[#allocation5 + $0x18] sm:$0xff]
    %v146 = vld [vmem:[%s7] sm:$0x1]
    %v148 = vlaneseq
    %v149 = vshrl.u32 %v148, 7
    %v150 = vsub.s32 0, %v149
    %v151 = vrot.slane %v146, %v150
    %vm153 = vcmask 261120
    %v155 = vsel %vm153, %v140, 0
    %v158 = vsel %vm153, %v141, 0
    %160 = vmatprep.subr.mxu0 0.0
    %161 = vmatpush1.msra.mxu0 %v142
    %162 = vmatprep.subr.mxu0 0.0
    %163 = vmatpush1.msra.mxu0 %v143
    %164 = vmatprep.subr.mxu0 0.0
    %165 = vmatpush1.msra.mxu0 %v144
    %166 = vmatprep.subr.mxu0 0.0
    %167 = vmatpush1.msra.mxu0 %v145
    %168 = vmatprep.subr.mxu0 0.0
    %169 = vmatpush1.msra.mxu0 0.0
    %170 = vmatprep.subr.mxu0 0.0
    %171 = vmatpush1.msra.mxu0 0.0
    %172 = vmatprep.subr.mxu0 0.0
    %173 = vmatpush1.msra.mxu0 0.0
    %174 = vmatprep.subr.mxu0 0.0
    %175 = vmatpush1.msra.mxu0 0.0
    %176 = vmatprep.subr.mxu0 0.0
    %177 = vmatpush1.msra.mxu0 0.0
    %178 = vmatprep.subr.mxu0 0.0
    %179 = vmatpush1.msra.mxu0 0.0
    %180 = vmatprep.subr.mxu0 0.0
    %181 = vmatpush1.msra.mxu0 0.0
    %182 = vmatprep.subr.mxu0 0.0
    %183 = vmatpush1.msra.mxu0 0.0
    %184 = vmatprep.subr.mxu0 0.0
    %185 = vmatpush1.msra.mxu0 0.0
    %186 = vmatprep.subr.mxu0 0.0
    %187 = vmatpush1.msra.mxu0 0.0
    %188 = vmatprep.subr.mxu0 0.0
    %189 = vmatpush1.msra.mxu0 0.0
    %190 = vmatprep.subr.mxu0 0.0
    %191 = vmatpush1.msra.mxu0 0.0
    %192 = vmatprep.subr.mxu0 0.0
    %193 = vmatpush1.msra.mxu0 0.0
    %194 = vmatprep.subr.mxu0 0.0
    %195 = vmatpush1.msra.mxu0 0.0
    %196 = vmatprep.subr.mxu0 0.0
    %197 = vmatpush1.msra.mxu0 0.0
    %198 = vmatprep.subr.mxu0 0.0
    %199 = vmatpush1.msra.mxu0 0.0
    %200 = vmatprep.subr.mxu0 0.0
    %201 = vmatpush1.msra.mxu0 0.0
    %202 = vmatprep.subr.mxu0 0.0
    %203 = vmatpush1.msra.mxu0 0.0
    %204 = vmatprep.subr.mxu0 0.0
    %205 = vmatpush1.msra.mxu0 0.0
    %206 = vmatprep.subr.mxu0 0.0
    %207 = vmatpush1.msra.mxu0 0.0
    %208 = vmatprep.subr.mxu0 0.0
    %209 = vmatpush1.msra.mxu0 0.0
    %210 = vmatprep.subr.mxu0 0.0
    %211 = vmatpush1.msra.mxu0 0.0
    %212 = vmatprep.subr.mxu0 0.0
    %213 = vmatpush1.msra.mxu0 0.0
    %214 = vmatprep.subr.mxu0 0.0
    %215 = vmatpush1.msra.mxu0 0.0
    %216 = vmatprep.subr.mxu0 0.0
    %217 = vmatpush1.msra.mxu0 0.0
    %218 = vmatprep.subr.mxu0 0.0
    %219 = vmatpush1.msra.mxu0 0.0
    %220 = vmatprep.subr.mxu0 0.0
    %221 = vmatpush1.msra.mxu0 0.0
    %222 = vmatprep.subr.mxu0 0.0
    %223 = vmatpush1.msra.mxu0 0.0
    %224 = vmatprep.mubr.f32.mxu0 0.0
    %225 = vmatmul.mubr.f32.gmra.mrb[0].mxu0 %v155
    %v226 = vpop.f32.mrb[0].mxu0
    %v227 = vadd.f32 %v151, %v226
    %v228 = vpop.f32.mrb[0].mxu0
    %229 = vmatprep.mubr.f32.mxu0 0.0
    %230 = vmatmul.mubr.f32.gmra.mrb[0].mxu0 %v158
    %v231 = vpop.f32.mrb[0].mxu0
    %v232 = vadd.f32 %v151, %v231
    %v233 = vpop.f32.mrb[0].mxu0
    %234 = vdwg.mxu0
    %v235 = vld [vmem:[#allocation7] sm:$0xff]
    %v236 = vld [vmem:[#allocation7 + $0x8] sm:$0xff]
    %v237 = vld [vmem:[#allocation7 + $0x10] sm:$0xff]
    %v238 = vld [vmem:[#allocation7 + $0x18] sm:$0xff]
    %v239 = vld [vmem:[%s8] sm:$0x1]
    %v241 = vlaneseq
    %v242 = vshrl.u32 %v241, 7
    %v243 = vsub.s32 0, %v242
    %v244 = vrot.slane %v239, %v243
    %246 = vmatprep.subr.mxu0 0.0
    %247 = vmatpush1.msra.mxu0 %v235
    %248 = vmatprep.subr.mxu0 0.0
    %249 = vmatpush1.msra.mxu0 %v236
    %250 = vmatprep.subr.mxu0 0.0
    %251 = vmatpush1.msra.mxu0 %v237
    %252 = vmatprep.subr.mxu0 0.0
    %253 = vmatpush1.msra.mxu0 %v238
    %254 = vmatprep.subr.mxu0 0.0
    %255 = vmatpush1.msra.mxu0 0.0
    %256 = vmatprep.subr.mxu0 0.0
    %257 = vmatpush1.msra.mxu0 0.0
    %258 = vmatprep.subr.mxu0 0.0
    %259 = vmatpush1.msra.mxu0 0.0
    %260 = vmatprep.subr.mxu0 0.0
    %261 = vmatpush1.msra.mxu0 0.0
    %262 = vmatprep.subr.mxu0 0.0
    %263 = vmatpush1.msra.mxu0 0.0
    %264 = vmatprep.subr.mxu0 0.0
    %265 = vmatpush1.msra.mxu0 0.0
    %266 = vmatprep.subr.mxu0 0.0
    %267 = vmatpush1.msra.mxu0 0.0
    %268 = vmatprep.subr.mxu0 0.0
    %269 = vmatpush1.msra.mxu0 0.0
    %270 = vmatprep.subr.mxu0 0.0
    %271 = vmatpush1.msra.mxu0 0.0
    %272 = vmatprep.subr.mxu0 0.0
    %273 = vmatpush1.msra.mxu0 0.0
    %274 = vmatprep.subr.mxu0 0.0
    %275 = vmatpush1.msra.mxu0 0.0
    %276 = vmatprep.subr.mxu0 0.0
    %277 = vmatpush1.msra.mxu0 0.0
    %278 = vmatprep.subr.mxu0 0.0
    %279 = vmatpush1.msra.mxu0 0.0
    %280 = vmatprep.subr.mxu0 0.0
    %281 = vmatpush1.msra.mxu0 0.0
    %282 = vmatprep.subr.mxu0 0.0
    %283 = vmatpush1.msra.mxu0 0.0
    %284 = vmatprep.subr.mxu0 0.0
    %285 = vmatpush1.msra.mxu0 0.0
    %286 = vmatprep.subr.mxu0 0.0
    %287 = vmatpush1.msra.mxu0 0.0
    %288 = vmatprep.subr.mxu0 0.0
    %289 = vmatpush1.msra.mxu0 0.0
    %290 = vmatprep.subr.mxu0 0.0
    %291 = vmatpush1.msra.mxu0 0.0
    %292 = vmatprep.subr.mxu0 0.0
    %293 = vmatpush1.msra.mxu0 0.0
    %294 = vmatprep.subr.mxu0 0.0
    %295 = vmatpush1.msra.mxu0 0.0
    %296 = vmatprep.subr.mxu0 0.0
    %297 = vmatpush1.msra.mxu0 0.0
    %298 = vmatprep.subr.mxu0 0.0
    %299 = vmatpush1.msra.mxu0 0.0
    %300 = vmatprep.subr.mxu0 0.0
    %301 = vmatpush1.msra.mxu0 0.0
    %302 = vmatprep.subr.mxu0 0.0
    %303 = vmatpush1.msra.mxu0 0.0
    %304 = vmatprep.subr.mxu0 0.0
    %305 = vmatpush1.msra.mxu0 0.0
    %306 = vmatprep.subr.mxu0 0.0
    %307 = vmatpush1.msra.mxu0 0.0
    %308 = vmatprep.subr.mxu0 0.0
    %309 = vmatpush1.msra.mxu0 0.0
    %310 = vmatprep.mubr.f32.mxu0 0.0
    %311 = vmatmul.mubr.f32.gmra.mrb[0].mxu0 %v155
    %v312 = vpop.f32.mrb[0].mxu0
    %v313 = vadd.f32 %v244, %v312
    %v314 = vpop.f32.mrb[0].mxu0
    %315 = vmatprep.mubr.f32.mxu0 0.0
    %316 = vmatmul.mubr.f32.gmra.mrb[0].mxu0 %v158
    %v317 = vpop.f32.mrb[0].mxu0
    %v318 = vadd.f32 %v244, %v317
    %v319 = vpop.f32.mrb[0].mxu0
    %320 = vdwg.mxu0
    %v321 = vld [vmem:[#allocation8] sm:$0xff]
    %v322 = vld [vmem:[#allocation8 + $0x8] sm:$0xff]
    %v323 = vld [vmem:[#allocation8 + $0x10] sm:$0xff]
    %v324 = vld [vmem:[#allocation8 + $0x18] sm:$0xff]
    %v325 = vld [vmem:[%s9] sm:$0x1]
    %v327 = vlaneseq
    %v328 = vshrl.u32 %v327, 7
    %v329 = vsub.s32 0, %v328
    %v330 = vrot.slane %v325, %v329
    %332 = vmatprep.subr.mxu0 0.0
    %333 = vmatpush1.msra.mxu0 %v321
    %334 = vmatprep.subr.mxu0 0.0
    %335 = vmatpush1.msra.mxu0 %v322
    %336 = vmatprep.subr.mxu0 0.0
    %337 = vmatpush1.msra.mxu0 %v323
    %338 = vmatprep.subr.mxu0 0.0
    %339 = vmatpush1.msra.mxu0 %v324
    %340 = vmatprep.subr.mxu0 0.0
    %341 = vmatpush1.msra.mxu0 0.0
    %342 = vmatprep.subr.mxu0 0.0
    %343 = vmatpush1.msra.mxu0 0.0
    %344 = vmatprep.subr.mxu0 0.0
    %345 = vmatpush1.msra.mxu0 0.0
    %346 = vmatprep.subr.mxu0 0.0
    %347 = vmatpush1.msra.mxu0 0.0
    %348 = vmatprep.subr.mxu0 0.0
    %349 = vmatpush1.msra.mxu0 0.0
    %350 = vmatprep.subr.mxu0 0.0
    %351 = vmatpush1.msra.mxu0 0.0
    %352 = vmatprep.subr.mxu0 0.0
    %353 = vmatpush1.msra.mxu0 0.0
    %354 = vmatprep.subr.mxu0 0.0
    %355 = vmatpush1.msra.mxu0 0.0
    %356 = vmatprep.subr.mxu0 0.0
    %357 = vmatpush1.msra.mxu0 0.0
    %358 = vmatprep.subr.mxu0 0.0
    %359 = vmatpush1.msra.mxu0 0.0
    %360 = vmatprep.subr.mxu0 0.0
    %361 = vmatpush1.msra.mxu0 0.0
    %362 = vmatprep.subr.mxu0 0.0
    %363 = vmatpush1.msra.mxu0 0.0
    %364 = vmatprep.subr.mxu0 0.0
    %365 = vmatpush1.msra.mxu0 0.0
    %366 = vmatprep.subr.mxu0 0.0
    %367 = vmatpush1.msra.mxu0 0.0
    %368 = vmatprep.subr.mxu0 0.0
    %369 = vmatpush1.msra.mxu0 0.0
    %370 = vmatprep.subr.mxu0 0.0
    %371 = vmatpush1.msra.mxu0 0.0
    %372 = vmatprep.subr.mxu0 0.0
    %373 = vmatpush1.msra.mxu0 0.0
    %374 = vmatprep.subr.mxu0 0.0
    %375 = vmatpush1.msra.mxu0 0.0
    %376 = vmatprep.subr.mxu0 0.0
    %377 = vmatpush1.msra.mxu0 0.0
    %378 = vmatprep.subr.mxu0 0.0
    %379 = vmatpush1.msra.mxu0 0.0
    %380 = vmatprep.subr.mxu0 0.0
    %381 = vmatpush1.msra.mxu0 0.0
    %382 = vmatprep.subr.mxu0 0.0
    %383 = vmatpush1.msra.mxu0 0.0
    %384 = vmatprep.subr.mxu0 0.0
    %385 = vmatpush1.msra.mxu0 0.0
    %386 = vmatprep.subr.mxu0 0.0
    %387 = vmatpush1.msra.mxu0 0.0
    %388 = vmatprep.subr.mxu0 0.0
    %389 = vmatpush1.msra.mxu0 0.0
    %390 = vmatprep.subr.mxu0 0.0
    %391 = vmatpush1.msra.mxu0 0.0
    %392 = vmatprep.subr.mxu0 0.0
    %393 = vmatpush1.msra.mxu0 0.0
    %394 = vmatprep.subr.mxu0 0.0
    %395 = vmatpush1.msra.mxu0 0.0
    %396 = vmatprep.mubr.f32.mxu0 0.0
    %397 = vmatmul.mubr.f32.gmra.mrb[0].mxu0 %v155
    %v398 = vpop.f32.mrb[0].mxu0
    %v399 = vadd.f32 %v330, %v398
    %v400 = vpop.f32.mrb[0].mxu0
    %401 = vmatprep.mubr.f32.mxu0 0.0
    %402 = vmatmul.mubr.f32.gmra.mrb[0].mxu0 %v158
    %v403 = vpop.f32.mrb[0].mxu0
    %v404 = vadd.f32 %v330, %v403
    %v405 = vpop.f32.mrb[0].mxu0
    %406 = vdwg.mxu0
    %v407 = vld [vmem:[#allocation10] sm:$0xff]
    %v408 = vld [vmem:[#allocation10 + $0x8] sm:$0xff]
    %v409 = vld [vmem:[#allocation10 + $0x10] sm:$0xff]
    %v410 = vld [vmem:[#allocation10 + $0x18] sm:$0xff]
    %v411 = vld [vmem:[#allocation11] sm:$0xff]
    %v412 = vld [vmem:[#allocation11 + $0x8] sm:$0xff]
    %v413 = vld [vmem:[#allocation11 + $0x10] sm:$0xff]
    %v414 = vld [vmem:[#allocation11 + $0x18] sm:$0xff]
    %v415 = vld [vmem:[#allocation13] sm:$0xff]
    %v416 = vld [vmem:[#allocation13 + $0x8] sm:$0xff]
    %v417 = vld [vmem:[#allocation13 + $0x10] sm:$0xff]
    %v418 = vld [vmem:[#allocation13 + $0x18] sm:$0xff]
    %v419 = vld [vmem:[%s10] sm:$0x1]
    %v420 = vld [vmem:[%s11] sm:$0x3]
    %v422 = vsel %vm153, %v420, 0
    %424 = vmatprep.subr.mxu0 0.0
    %425 = vmatpush1.msra.mxu0 %v407
    %426 = vmatprep.subr.mxu0 0.0
    %427 = vmatpush1.msra.mxu0 %v408
    %428 = vmatprep.subr.mxu0 0.0
    %429 = vmatpush1.msra.mxu0 %v409
    %430 = vmatprep.subr.mxu0 0.0
    %431 = vmatpush1.msra.mxu0 %v410
    %432 = vmatprep.subr.mxu0 0.0
    %433 = vmatpush1.msra.mxu0 0.0
    %434 = vmatprep.subr.mxu0 0.0
    %435 = vmatpush1.msra.mxu0 0.0
    %436 = vmatprep.subr.mxu0 0.0
    %437 = vmatpush1.msra.mxu0 0.0
    %438 = vmatprep.subr.mxu0 0.0
    %439 = vmatpush1.msra.mxu0 0.0
    %440 = vmatprep.subr.mxu0 0.0
    %441 = vmatpush1.msra.mxu0 0.0
    %442 = vmatprep.subr.mxu0 0.0
    %443 = vmatpush1.msra.mxu0 0.0
    %444 = vmatprep.subr.mxu0 0.0
    %445 = vmatpush1.msra.mxu0 0.0
    %446 = vmatprep.subr.mxu0 0.0
    %447 = vmatpush1.msra.mxu0 0.0
    %448 = vmatprep.subr.mxu0 0.0
    %449 = vmatpush1.msra.mxu0 0.0
    %450 = vmatprep.subr.mxu0 0.0
    %451 = vmatpush1.msra.mxu0 0.0
    %452 = vmatprep.subr.mxu0 0.0
    %453 = vmatpush1.msra.mxu0 0.0
    %454 = vmatprep.subr.mxu0 0.0
    %455 = vmatpush1.msra.mxu0 0.0
    %456 = vmatprep.subr.mxu0 0.0
    %457 = vmatpush1.msra.mxu0 0.0
    %458 = vmatprep.subr.mxu0 0.0
    %459 = vmatpush1.msra.mxu0 0.0
    %460 = vmatprep.subr.mxu0 0.0
    %461 = vmatpush1.msra.mxu0 0.0
    %462 = vmatprep.subr.mxu0 0.0
    %463 = vmatpush1.msra.mxu0 0.0
    %464 = vmatprep.subr.mxu0 0.0
    %465 = vmatpush1.msra.mxu0 0.0
    %466 = vmatprep.subr.mxu0 0.0
    %467 = vmatpush1.msra.mxu0 0.0
    %468 = vmatprep.subr.mxu0 0.0
    %469 = vmatpush1.msra.mxu0 0.0
    %470 = vmatprep.subr.mxu0 0.0
    %471 = vmatpush1.msra.mxu0 0.0
    %472 = vmatprep.subr.mxu0 0.0
    %473 = vmatpush1.msra.mxu0 0.0
    %474 = vmatprep.subr.mxu0 0.0
    %475 = vmatpush1.msra.mxu0 0.0
    %476 = vmatprep.subr.mxu0 0.0
    %477 = vmatpush1.msra.mxu0 0.0
    %478 = vmatprep.subr.mxu0 0.0
    %479 = vmatpush1.msra.mxu0 0.0
    %480 = vmatprep.subr.mxu0 0.0
    %481 = vmatpush1.msra.mxu0 0.0
    %482 = vmatprep.subr.mxu0 0.0
    %483 = vmatpush1.msra.mxu0 0.0
    %484 = vmatprep.subr.mxu0 0.0
    %485 = vmatpush1.msra.mxu0 0.0
    %486 = vmatprep.subr.mxu0 0.0
    %487 = vmatpush1.msra.mxu0 0.0
    %488 = vmatprep.mubr.f32.mxu0 0.0
    %489 = vmatmul.mubr.f32.gmra.mrb[0].mxu0 %v422
    %v490 = vpop.f32.mrb[0].mxu0
    %v491 = vadd.f32 0.0, %v490
    %v492 = vpop.f32.mrb[0].mxu0
    %493 = vdwg.mxu0
    %494 = vmatprep.subr.mxu0 0.0
    %495 = vmatpush1.msra.mxu0 %v411
    %496 = vmatprep.subr.mxu0 0.0
    %497 = vmatpush1.msra.mxu0 %v412
    %498 = vmatprep.subr.mxu0 0.0
    %499 = vmatpush1.msra.mxu0 %v413
    %500 = vmatprep.subr.mxu0 0.0
    %501 = vmatpush1.msra.mxu0 %v414
    %502 = vmatprep.subr.mxu0 0.0
    %503 = vmatpush1.msra.mxu0 0.0
    %504 = vmatprep.subr.mxu0 0.0
    %505 = vmatpush1.msra.mxu0 0.0
    %506 = vmatprep.subr.mxu0 0.0
    %507 = vmatpush1.msra.mxu0 0.0
    %508 = vmatprep.subr.mxu0 0.0
    %509 = vmatpush1.msra.mxu0 0.0
    %510 = vmatprep.subr.mxu0 0.0
    %511 = vmatpush1.msra.mxu0 0.0
    %512 = vmatprep.subr.mxu0 0.0
    %513 = vmatpush1.msra.mxu0 0.0
    %514 = vmatprep.subr.mxu0 0.0
    %515 = vmatpush1.msra.mxu0 0.0
    %516 = vmatprep.subr.mxu0 0.0
    %517 = vmatpush1.msra.mxu0 0.0
    %518 = vmatprep.subr.mxu0 0.0
    %519 = vmatpush1.msra.mxu0 0.0
    %520 = vmatprep.subr.mxu0 0.0
    %521 = vmatpush1.msra.mxu0 0.0
    %522 = vmatprep.subr.mxu0 0.0
    %523 = vmatpush1.msra.mxu0 0.0
    %524 = vmatprep.subr.mxu0 0.0
    %525 = vmatpush1.msra.mxu0 0.0
    %526 = vmatprep.subr.mxu0 0.0
    %527 = vmatpush1.msra.mxu0 0.0
    %528 = vmatprep.subr.mxu0 0.0
    %529 = vmatpush1.msra.mxu0 0.0
    %530 = vmatprep.subr.mxu0 0.0
    %531 = vmatpush1.msra.mxu0 0.0
    %532 = vmatprep.subr.mxu0 0.0
    %533 = vmatpush1.msra.mxu0 0.0
    %534 = vmatprep.subr.mxu0 0.0
    %535 = vmatpush1.msra.mxu0 0.0
    %536 = vmatprep.subr.mxu0 0.0
    %537 = vmatpush1.msra.mxu0 0.0
    %538 = vmatprep.subr.mxu0 0.0
    %539 = vmatpush1.msra.mxu0 0.0
    %540 = vmatprep.subr.mxu0 0.0
    %541 = vmatpush1.msra.mxu0 0.0
    %542 = vmatprep.subr.mxu0 0.0
    %543 = vmatpush1.msra.mxu0 0.0
    %544 = vmatprep.subr.mxu0 0.0
    %545 = vmatpush1.msra.mxu0 0.0
    %546 = vmatprep.subr.mxu0 0.0
    %547 = vmatpush1.msra.mxu0 0.0
    %548 = vmatprep.subr.mxu0 0.0
    %549 = vmatpush1.msra.mxu0 0.0
    %550 = vmatprep.subr.mxu0 0.0
    %551 = vmatpush1.msra.mxu0 0.0
    %552 = vmatprep.subr.mxu0 0.0
    %553 = vmatpush1.msra.mxu0 0.0
    %554 = vmatprep.subr.mxu0 0.0
    %555 = vmatpush1.msra.mxu0 0.0
    %556 = vmatprep.subr.mxu0 0.0
    %557 = vmatpush1.msra.mxu0 0.0
    %558 = vmatprep.mubr.f32.mxu0 0.0
    %559 = vmatmul.mubr.f32.gmra.mrb[0].mxu0 %v422
    %v560 = vpop.f32.mrb[0].mxu0
    %v561 = vadd.f32 0.0, %v560
    %v562 = vpop.f32.mrb[0].mxu0
    %563 = vdwg.mxu0
    %v565 = vlaneseq
    %v566 = vshrl.u32 %v565, 7
    %v567 = vsub.s32 0, %v566
    %v568 = vrot.slane %v419, %v567
    %570 = vmatprep.subr.mxu0 0.0
    %571 = vmatpush1.msra.mxu0 %v415
    %572 = vmatprep.subr.mxu0 0.0
    %573 = vmatpush1.msra.mxu0 %v416
    %574 = vmatprep.subr.mxu0 0.0
    %575 = vmatpush1.msra.mxu0 %v417
    %576 = vmatprep.subr.mxu0 0.0
    %577 = vmatpush1.msra.mxu0 %v418
    %578 = vmatprep.subr.mxu0 0.0
    %579 = vmatpush1.msra.mxu0 0.0
    %580 = vmatprep.subr.mxu0 0.0
    %581 = vmatpush1.msra.mxu0 0.0
    %582 = vmatprep.subr.mxu0 0.0
    %583 = vmatpush1.msra.mxu0 0.0
    %584 = vmatprep.subr.mxu0 0.0
    %585 = vmatpush1.msra.mxu0 0.0
    %586 = vmatprep.subr.mxu0 0.0
    %587 = vmatpush1.msra.mxu0 0.0
    %588 = vmatprep.subr.mxu0 0.0
    %589 = vmatpush1.msra.mxu0 0.0
    %590 = vmatprep.subr.mxu0 0.0
    %591 = vmatpush1.msra.mxu0 0.0
    %592 = vmatprep.subr.mxu0 0.0
    %593 = vmatpush1.msra.mxu0 0.0
    %594 = vmatprep.subr.mxu0 0.0
    %595 = vmatpush1.msra.mxu0 0.0
    %596 = vmatprep.subr.mxu0 0.0
    %597 = vmatpush1.msra.mxu0 0.0
    %598 = vmatprep.subr.mxu0 0.0
    %599 = vmatpush1.msra.mxu0 0.0
    %600 = vmatprep.subr.mxu0 0.0
    %601 = vmatpush1.msra.mxu0 0.0
    %602 = vmatprep.subr.mxu0 0.0
    %603 = vmatpush1.msra.mxu0 0.0
    %604 = vmatprep.subr.mxu0 0.0
    %605 = vmatpush1.msra.mxu0 0.0
    %606 = vmatprep.subr.mxu0 0.0
    %607 = vmatpush1.msra.mxu0 0.0
    %608 = vmatprep.subr.mxu0 0.0
    %609 = vmatpush1.msra.mxu0 0.0
    %610 = vmatprep.subr.mxu0 0.0
    %611 = vmatpush1.msra.mxu0 0.0
    %612 = vmatprep.subr.mxu0 0.0
    %613 = vmatpush1.msra.mxu0 0.0
    %614 = vmatprep.subr.mxu0 0.0
    %615 = vmatpush1.msra.mxu0 0.0
    %616 = vmatprep.subr.mxu0 0.0
    %617 = vmatpush1.msra.mxu0 0.0
    %618 = vmatprep.subr.mxu0 0.0
    %619 = vmatpush1.msra.mxu0 0.0
    %620 = vmatprep.subr.mxu0 0.0
    %621 = vmatpush1.msra.mxu0 0.0
    %622 = vmatprep.subr.mxu0 0.0
    %623 = vmatpush1.msra.mxu0 0.0
    %624 = vmatprep.subr.mxu0 0.0
    %625 = vmatpush1.msra.mxu0 0.0
    %626 = vmatprep.subr.mxu0 0.0
    %627 = vmatpush1.msra.mxu0 0.0
    %628 = vmatprep.subr.mxu0 0.0
    %629 = vmatpush1.msra.mxu0 0.0
    %630 = vmatprep.subr.mxu0 0.0
    %631 = vmatpush1.msra.mxu0 0.0
    %632 = vmatprep.subr.mxu0 0.0
    %633 = vmatpush1.msra.mxu0 0.0
    %634 = vmatprep.mubr.f32.mxu0 0.0
    %635 = vmatmul.mubr.f32.gmra.mrb[0].mxu0 %v422
    %v636 = vpop.f32.mrb[0].mxu0
    %v637 = vadd.f32 %v568, %v636
    %v638 = vpop.f32.mrb[0].mxu0
    %639 = vdwg.mxu0
    %v640 = vadd.f32 %v227, %v491
    %v641 = vxor.u32 %v640, 2147483648
    %v642 = vmul.f32 %v641, 1.442695
    %v643 = vpow.pop %v642
    %v644 = vadd.f32 %v643, 1.0
    %v645 = vrcp.pop %v644
    %v646 = vmul.f32 1.0, %v645
    %v647 = vadd.f32 %v313, %v561
    %v648 = vxor.u32 %v647, 2147483648
    %v649 = vmul.f32 %v648, 1.442695
    %v650 = vpow.pop %v649
    %v651 = vadd.f32 %v650, 1.0
    %v652 = vrcp.pop %v651
    %v653 = vmul.f32 1.0, %v652
    %v654 = vmul.f32 %v646, %v637
    %v655 = vadd.f32 %v399, %v654
    %v656 = vtanh.pop %v655
    %v657 = vsub.f32 1.0, %v653
    %v658 = vmul.f32 %v657, %v656
    %v659 = vmul.f32 %v653, %v420
    %v660 = vadd.f32 %v658, %v659
    %vm661 = vcmask 254976
    %662 = vst.msk [vmem:[#allocation14] sm:$0x3] %vm661, %v660
    %v664 = vsel %vm153, %v660, 0
    %666 = vmatprep.subr.mxu0 0.0
    %667 = vmatpush1.msra.mxu0 %v407
    %668 = vmatprep.subr.mxu0 0.0
    %669 = vmatpush1.msra.mxu0 %v408
    %670 = vmatprep.subr.mxu0 0.0
    %671 = vmatpush1.msra.mxu0 %v409
    %672 = vmatprep.subr.mxu0 0.0
    %673 = vmatpush1.msra.mxu0 %v410
    %674 = vmatprep.subr.mxu0 0.0
    %675 = vmatpush1.msra.mxu0 0.0
    %676 = vmatprep.subr.mxu0 0.0
    %677 = vmatpush1.msra.mxu0 0.0
    %678 = vmatprep.subr.mxu0 0.0
    %679 = vmatpush1.msra.mxu0 0.0
    %680 = vmatprep.subr.mxu0 0.0
    %681 = vmatpush1.msra.mxu0 0.0
    %682 = vmatprep.subr.mxu0 0.0
    %683 = vmatpush1.msra.mxu0 0.0
    %684 = vmatprep.subr.mxu0 0.0
    %685 = vmatpush1.msra.mxu0 0.0
    %686 = vmatprep.subr.mxu0 0.0
    %687 = vmatpush1.msra.mxu0 0.0
    %688 = vmatprep.subr.mxu0 0.0
    %689 = vmatpush1.msra.mxu0 0.0
    %690 = vmatprep.subr.mxu0 0.0
    %691 = vmatpush1.msra.mxu0 0.0
    %692 = vmatprep.subr.mxu0 0.0
    %693 = vmatpush1.msra.mxu0 0.0
    %694 = vmatprep.subr.mxu0 0.0
    %695 = vmatpush1.msra.mxu0 0.0
    %696 = vmatprep.subr.mxu0 0.0
    %697 = vmatpush1.msra.mxu0 0.0
    %698 = vmatprep.subr.mxu0 0.0
    %699 = vmatpush1.msra.mxu0 0.0
    %700 = vmatprep.subr.mxu0 0.0
    %701 = vmatpush1.msra.mxu0 0.0
    %702 = vmatprep.subr.mxu0 0.0
    %703 = vmatpush1.msra.mxu0 0.0
    %704 = vmatprep.subr.mxu0 0.0
    %705 = vmatpush1.msra.mxu0 0.0
    %706 = vmatprep.subr.mxu0 0.0
    %707 = vmatpush1.msra.mxu0 0.0
    %708 = vmatprep.subr.mxu0 0.0
    %709 = vmatpush1.msra.mxu0 0.0
    %710 = vmatprep.subr.mxu0 0.0
    %711 = vmatpush1.msra.mxu0 0.0
    %712 = vmatprep.subr.mxu0 0.0
    %713 = vmatpush1.msra.mxu0 0.0
    %714 = vmatprep.subr.mxu0 0.0
    %715 = vmatpush1.msra.mxu0 0.0
    %716 = vmatprep.subr.mxu0 0.0
    %717 = vmatpush1.msra.mxu0 0.0
    %718 = vmatprep.subr.mxu0 0.0
    %719 = vmatpush1.msra.mxu0 0.0
    %720 = vmatprep.subr.mxu0 0.0
    %721 = vmatpush1.msra.mxu0 0.0
    %722 = vmatprep.subr.mxu0 0.0
    %723 = vmatpush1.msra.mxu0 0.0
    %724 = vmatprep.subr.mxu0 0.0
    %725 = vmatpush1.msra.mxu0 0.0
    %726 = vmatprep.subr.mxu0 0.0
    %727 = vmatpush1.msra.mxu0 0.0
    %728 = vmatprep.subr.mxu0 0.0
    %729 = vmatpush1.msra.mxu0 0.0
    %730 = vmatprep.mubr.f32.mxu0 0.0
    %731 = vmatmul.mubr.f32.gmra.mrb[0].mxu0 %v664
    %v732 = vpop.f32.mrb[0].mxu0
    %v733 = vadd.f32 0.0, %v732
    %v734 = vpop.f32.mrb[0].mxu0
    %735 = vdwg.mxu0
    %736 = vmatprep.subr.mxu0 0.0
    %737 = vmatpush1.msra.mxu0 %v411
    %738 = vmatprep.subr.mxu0 0.0
    %739 = vmatpush1.msra.mxu0 %v412
    %740 = vmatprep.subr.mxu0 0.0
    %741 = vmatpush1.msra.mxu0 %v413
    %742 = vmatprep.subr.mxu0 0.0
    %743 = vmatpush1.msra.mxu0 %v414
    %744 = vmatprep.subr.mxu0 0.0
    %745 = vmatpush1.msra.mxu0 0.0
    %746 = vmatprep.subr.mxu0 0.0
    %747 = vmatpush1.msra.mxu0 0.0
    %748 = vmatprep.subr.mxu0 0.0
    %749 = vmatpush1.msra.mxu0 0.0
    %750 = vmatprep.subr.mxu0 0.0
    %751 = vmatpush1.msra.mxu0 0.0
    %752 = vmatprep.subr.mxu0 0.0
    %753 = vmatpush1.msra.mxu0 0.0
    %754 = vmatprep.subr.mxu0 0.0
    %755 = vmatpush1.msra.mxu0 0.0
    %756 = vmatprep.subr.mxu0 0.0
    %757 = vmatpush1.msra.mxu0 0.0
    %758 = vmatprep.subr.mxu0 0.0
    %759 = vmatpush1.msra.mxu0 0.0
    %760 = vmatprep.subr.mxu0 0.0
    %761 = vmatpush1.msra.mxu0 0.0
    %762 = vmatprep.subr.mxu0 0.0
    %763 = vmatpush1.msra.mxu0 0.0
    %764 = vmatprep.subr.mxu0 0.0
    %765 = vmatpush1.msra.mxu0 0.0
    %766 = vmatprep.subr.mxu0 0.0
    %767 = vmatpush1.msra.mxu0 0.0
    %768 = vmatprep.subr.mxu0 0.0
    %769 = vmatpush1.msra.mxu0 0.0
    %770 = vmatprep.subr.mxu0 0.0
    %771 = vmatpush1.msra.mxu0 0.0
    %772 = vmatprep.subr.mxu0 0.0
    %773 = vmatpush1.msra.mxu0 0.0
    %774 = vmatprep.subr.mxu0 0.0
    %775 = vmatpush1.msra.mxu0 0.0
    %776 = vmatprep.subr.mxu0 0.0
    %777 = vmatpush1.msra.mxu0 0.0
    %778 = vmatprep.subr.mxu0 0.0
    %779 = vmatpush1.msra.mxu0 0.0
    %780 = vmatprep.subr.mxu0 0.0
    %781 = vmatpush1.msra.mxu0 0.0
    %782 = vmatprep.subr.mxu0 0.0
    %783 = vmatpush1.msra.mxu0 0.0
    %784 = vmatprep.subr.mxu0 0.0
    %785 = vmatpush1.msra.mxu0 0.0
    %786 = vmatprep.subr.mxu0 0.0
    %787 = vmatpush1.msra.mxu0 0.0
    %788 = vmatprep.subr.mxu0 0.0
    %789 = vmatpush1.msra.mxu0 0.0
    %790 = vmatprep.subr.mxu0 0.0
    %791 = vmatpush1.msra.mxu0 0.0
    %792 = vmatprep.subr.mxu0 0.0
    %793 = vmatpush1.msra.mxu0 0.0
    %794 = vmatprep.subr.mxu0 0.0
    %795 = vmatpush1.msra.mxu0 0.0
    %796 = vmatprep.subr.mxu0 0.0
    %797 = vmatpush1.msra.mxu0 0.0
    %798 = vmatprep.subr.mxu0 0.0
    %799 = vmatpush1.msra.mxu0 0.0
    %800 = vmatprep.mubr.f32.mxu0 0.0
    %801 = vmatmul.mubr.f32.gmra.mrb[0].mxu0 %v664
    %v802 = vpop.f32.mrb[0].mxu0
    %v803 = vadd.f32 0.0, %v802
    %v804 = vpop.f32.mrb[0].mxu0
    %805 = vdwg.mxu0
    %806 = vmatprep.subr.mxu0 0.0
    %807 = vmatpush1.msra.mxu0 %v415
    %808 = vmatprep.subr.mxu0 0.0
    %809 = vmatpush1.msra.mxu0 %v416
    %810 = vmatprep.subr.mxu0 0.0
    %811 = vmatpush1.msra.mxu0 %v417
    %812 = vmatprep.subr.mxu0 0.0
    %813 = vmatpush1.msra.mxu0 %v418
    %814 = vmatprep.subr.mxu0 0.0
    %815 = vmatpush1.msra.mxu0 0.0
    %816 = vmatprep.subr.mxu0 0.0
    %817 = vmatpush1.msra.mxu0 0.0
    %818 = vmatprep.subr.mxu0 0.0
    %819 = vmatpush1.msra.mxu0 0.0
    %820 = vmatprep.subr.mxu0 0.0
    %821 = vmatpush1.msra.mxu0 0.0
    %822 = vmatprep.subr.mxu0 0.0
    %823 = vmatpush1.msra.mxu0 0.0
    %824 = vmatprep.subr.mxu0 0.0
    %825 = vmatpush1.msra.mxu0 0.0
    %826 = vmatprep.subr.mxu0 0.0
    %827 = vmatpush1.msra.mxu0 0.0
    %828 = vmatprep.subr.mxu0 0.0
    %829 = vmatpush1.msra.mxu0 0.0
    %830 = vmatprep.subr.mxu0 0.0
    %831 = vmatpush1.msra.mxu0 0.0
    %832 = vmatprep.subr.mxu0 0.0
    %833 = vmatpush1.msra.mxu0 0.0
    %834 = vmatprep.subr.mxu0 0.0
    %835 = vmatpush1.msra.mxu0 0.0
    %836 = vmatprep.subr.mxu0 0.0
    %837 = vmatpush1.msra.mxu0 0.0
    %838 = vmatprep.subr.mxu0 0.0
    %839 = vmatpush1.msra.mxu0 0.0
    %840 = vmatprep.subr.mxu0 0.0
    %841 = vmatpush1.msra.mxu0 0.0
    %842 = vmatprep.subr.mxu0 0.0
    %843 = vmatpush1.msra.mxu0 0.0
    %844 = vmatprep.subr.mxu0 0.0
    %845 = vmatpush1.msra.mxu0 0.0
    %846 = vmatprep.subr.mxu0 0.0
    %847 = vmatpush1.msra.mxu0 0.0
    %848 = vmatprep.subr.mxu0 0.0
    %849 = vmatpush1.msra.mxu0 0.0
    %850 = vmatprep.subr.mxu0 0.0
    %851 = vmatpush1.msra.mxu0 0.0
    %852 = vmatprep.subr.mxu0 0.0
    %853 = vmatpush1.msra.mxu0 0.0
    %854 = vmatprep.subr.mxu0 0.0
    %855 = vmatpush1.msra.mxu0 0.0
    %856 = vmatprep.subr.mxu0 0.0
    %857 = vmatpush1.msra.mxu0 0.0
    %858 = vmatprep.subr.mxu0 0.0
    %859 = vmatpush1.msra.mxu0 0.0
    %860 = vmatprep.subr.mxu0 0.0
    %861 = vmatpush1.msra.mxu0 0.0
    %862 = vmatprep.subr.mxu0 0.0
    %863 = vmatpush1.msra.mxu0 0.0
    %864 = vmatprep.subr.mxu0 0.0
    %865 = vmatpush1.msra.mxu0 0.0
    %866 = vmatprep.subr.mxu0 0.0
    %867 = vmatpush1.msra.mxu0 0.0
    %868 = vmatprep.subr.mxu0 0.0
    %869 = vmatpush1.msra.mxu0 0.0
    %870 = vmatprep.mubr.f32.mxu0 0.0
    %871 = vmatmul.mubr.f32.gmra.mrb[0].mxu0 %v664
    %v872 = vpop.f32.mrb[0].mxu0
    %v873 = vadd.f32 %v568, %v872
    %v874 = vpop.f32.mrb[0].mxu0
    %875 = vdwg.mxu0
    %v877 = vrot.slane %v733, 6
    %v879 = vadd.f32 %v227, %v877
    %v880 = vxor.u32 %v879, 2147483648
    %v881 = vmul.f32 %v880, 1.442695
    %v882 = vpow.pop %v881
    %v883 = vadd.f32 %v882, 1.0
    %v884 = vrcp.pop %v883
    %v885 = vmul.f32 1.0, %v884
    %v887 = vrot.slane %v803, 6
    %v889 = vadd.f32 %v313, %v887
    %v890 = vxor.u32 %v889, 2147483648
    %v891 = vmul.f32 %v890, 1.442695
    %v892 = vpow.pop %v891
    %v893 = vadd.f32 %v892, 1.0
    %v894 = vrcp.pop %v893
    %v895 = vmul.f32 1.0, %v894
    %v897 = vrot.slane %v873, 6
    %v899 = vmul.f32 %v885, %v897
    %v900 = vadd.f32 %v399, %v899
    %v901 = vtanh.pop %v900
    %v902 = vsub.f32 1.0, %v895
    %v903 = vmul.f32 %v902, %v901
    %v904 = vrot.slane %v660, 6
    %v906 = vmul.f32 %v895, %v904
    %v907 = vadd.f32 %v903, %v906
    %vm908 = vcmask 257026
    %909 = vst.msk [vmem:[#allocation14] sm:$0xc] %vm908, %v907
    %v911 = vrot.slane %v907, 2
    %v912 = vsel %vm153, %v911, 0
    %914 = vmatprep.subr.mxu0 0.0
    %915 = vmatpush1.msra.mxu0 %v407
    %916 = vmatprep.subr.mxu0 0.0
    %917 = vmatpush1.msra.mxu0 %v408
    %918 = vmatprep.subr.mxu0 0.0
    %919 = vmatpush1.msra.mxu0 %v409
    %920 = vmatprep.subr.mxu0 0.0
    %921 = vmatpush1.msra.mxu0 %v410
    %922 = vmatprep.subr.mxu0 0.0
    %923 = vmatpush1.msra.mxu0 0.0
    %924 = vmatprep.subr.mxu0 0.0
    %925 = vmatpush1.msra.mxu0 0.0
    %926 = vmatprep.subr.mxu0 0.0
    %927 = vmatpush1.msra.mxu0 0.0
    %928 = vmatprep.subr.mxu0 0.0
    %929 = vmatpush1.msra.mxu0 0.0
    %930 = vmatprep.subr.mxu0 0.0
    %931 = vmatpush1.msra.mxu0 0.0
    %932 = vmatprep.subr.mxu0 0.0
    %933 = vmatpush1.msra.mxu0 0.0
    %934 = vmatprep.subr.mxu0 0.0
    %935 = vmatpush1.msra.mxu0 0.0
    %936 = vmatprep.subr.mxu0 0.0
    %937 = vmatpush1.msra.mxu0 0.0
    %938 = vmatprep.subr.mxu0 0.0
    %939 = vmatpush1.msra.mxu0 0.0
    %940 = vmatprep.subr.mxu0 0.0
    %941 = vmatpush1.msra.mxu0 0.0
    %942 = vmatprep.subr.mxu0 0.0
    %943 = vmatpush1.msra.mxu0 0.0
    %944 = vmatprep.subr.mxu0 0.0
    %945 = vmatpush1.msra.mxu0 0.0
    %946 = vmatprep.subr.mxu0 0.0
    %947 = vmatpush1.msra.mxu0 0.0
    %948 = vmatprep.subr.mxu0 0.0
    %949 = vmatpush1.msra.mxu0 0.0
    %950 = vmatprep.subr.mxu0 0.0
    %951 = vmatpush1.msra.mxu0 0.0
    %952 = vmatprep.subr.mxu0 0.0
    %953 = vmatpush1.msra.mxu0 0.0
    %954 = vmatprep.subr.mxu0 0.0
    %955 = vmatpush1.msra.mxu0 0.0
    %956 = vmatprep.subr.mxu0 0.0
    %957 = vmatpush1.msra.mxu0 0.0
    %958 = vmatprep.subr.mxu0 0.0
    %959 = vmatpush1.msra.mxu0 0.0
    %960 = vmatprep.subr.mxu0 0.0
    %961 = vmatpush1.msra.mxu0 0.0
    %962 = vmatprep.subr.mxu0 0.0
    %963 = vmatpush1.msra.mxu0 0.0
    %964 = vmatprep.subr.mxu0 0.0
    %965 = vmatpush1.msra.mxu0 0.0
    %966 = vmatprep.subr.mxu0 0.0
    %967 = vmatpush1.msra.mxu0 0.0
    %968 = vmatprep.subr.mxu0 0.0
    %969 = vmatpush1.msra.mxu0 0.0
    %970 = vmatprep.subr.mxu0 0.0
    %971 = vmatpush1.msra.mxu0 0.0
    %972 = vmatprep.subr.mxu0 0.0
    %973 = vmatpush1.msra.mxu0 0.0
    %974 = vmatprep.subr.mxu0 0.0
    %975 = vmatpush1.msra.mxu0 0.0
    %976 = vmatprep.subr.mxu0 0.0
    %977 = vmatpush1.msra.mxu0 0.0
    %978 = vmatprep.mubr.f32.mxu0 0.0
    %979 = vmatmul.mubr.f32.gmra.mrb[0].mxu0 %v912
    %v980 = vpop.f32.mrb[0].mxu0
    %v981 = vadd.f32 0.0, %v980
    %v982 = vpop.f32.mrb[0].mxu0
    %983 = vdwg.mxu0
    %984 = vmatprep.subr.mxu0 0.0
    %985 = vmatpush1.msra.mxu0 %v411
    %986 = vmatprep.subr.mxu0 0.0
    %987 = vmatpush1.msra.mxu0 %v412
    %988 = vmatprep.subr.mxu0 0.0
    %989 = vmatpush1.msra.mxu0 %v413
    %990 = vmatprep.subr.mxu0 0.0
    %991 = vmatpush1.msra.mxu0 %v414
    %992 = vmatprep.subr.mxu0 0.0
    %993 = vmatpush1.msra.mxu0 0.0
    %994 = vmatprep.subr.mxu0 0.0
    %995 = vmatpush1.msra.mxu0 0.0
    %996 = vmatprep.subr.mxu0 0.0
    %997 = vmatpush1.msra.mxu0 0.0
    %998 = vmatprep.subr.mxu0 0.0
    %999 = vmatpush1.msra.mxu0 0.0
    %1000 = vmatprep.subr.mxu0 0.0
    %1001 = vmatpush1.msra.mxu0 0.0
    %1002 = vmatprep.subr.mxu0 0.0
    %1003 = vmatpush1.msra.mxu0 0.0
    %1004 = vmatprep.subr.mxu0 0.0
    %1005 = vmatpush1.msra.mxu0 0.0
    %1006 = vmatprep.subr.mxu0 0.0
    %1007 = vmatpush1.msra.mxu0 0.0
    %1008 = vmatprep.subr.mxu0 0.0
    %1009 = vmatpush1.msra.mxu0 0.0
    %1010 = vmatprep.subr.mxu0 0.0
    %1011 = vmatpush1.msra.mxu0 0.0
    %1012 = vmatprep.subr.mxu0 0.0
    %1013 = vmatpush1.msra.mxu0 0.0
    %1014 = vmatprep.subr.mxu0 0.0
    %1015 = vmatpush1.msra.mxu0 0.0
    %1016 = vmatprep.subr.mxu0 0.0
    %1017 = vmatpush1.msra.mxu0 0.0
    %1018 = vmatprep.subr.mxu0 0.0
    %1019 = vmatpush1.msra.mxu0 0.0
    %1020 = vmatprep.subr.mxu0 0.0
    %1021 = vmatpush1.msra.mxu0 0.0
    %1022 = vmatprep.subr.mxu0 0.0
    %1023 = vmatpush1.msra.mxu0 0.0
    %1024 = vmatprep.subr.mxu0 0.0
    %1025 = vmatpush1.msra.mxu0 0.0
    %1026 = vmatprep.subr.mxu0 0.0
    %1027 = vmatpush1.msra.mxu0 0.0
    %1028 = vmatprep.subr.mxu0 0.0
    %1029 = vmatpush1.msra.mxu0 0.0
    %1030 = vmatprep.subr.mxu0 0.0
    %1031 = vmatpush1.msra.mxu0 0.0
    %1032 = vmatprep.subr.mxu0 0.0
    %1033 = vmatpush1.msra.mxu0 0.0
    %1034 = vmatprep.subr.mxu0 0.0
    %1035 = vmatpush1.msra.mxu0 0.0
    %1036 = vmatprep.subr.mxu0 0.0
    %1037 = vmatpush1.msra.mxu0 0.0
    %1038 = vmatprep.subr.mxu0 0.0
    %1039 = vmatpush1.msra.mxu0 0.0
    %1040 = vmatprep.subr.mxu0 0.0
    %1041 = vmatpush1.msra.mxu0 0.0
    %1042 = vmatprep.subr.mxu0 0.0
    %1043 = vmatpush1.msra.mxu0 0.0
    %1044 = vmatprep.subr.mxu0 0.0
    %1045 = vmatpush1.msra.mxu0 0.0
    %1046 = vmatprep.subr.mxu0 0.0
    %1047 = vmatpush1.msra.mxu0 0.0
    %1048 = vmatprep.mubr.f32.mxu0 0.0
    %1049 = vmatmul.mubr.f32.gmra.mrb[0].mxu0 %v912
    %v1050 = vpop.f32.mrb[0].mxu0
    %v1051 = vadd.f32 0.0, %v1050
    %v1052 = vpop.f32.mrb[0].mxu0
    %1053 = vdwg.mxu0
    %1054 = vmatprep.subr.mxu0 0.0
    %1055 = vmatpush1.msra.mxu0 %v415
    %1056 = vmatprep.subr.mxu0 0.0
    %1057 = vmatpush1.msra.mxu0 %v416
    %1058 = vmatprep.subr.mxu0 0.0
    %1059 = vmatpush1.msra.mxu0 %v417
    %1060 = vmatprep.subr.mxu0 0.0
    %1061 = vmatpush1.msra.mxu0 %v418
    %1062 = vmatprep.subr.mxu0 0.0
    %1063 = vmatpush1.msra.mxu0 0.0
    %1064 = vmatprep.subr.mxu0 0.0
    %1065 = vmatpush1.msra.mxu0 0.0
    %1066 = vmatprep.subr.mxu0 0.0
    %1067 = vmatpush1.msra.mxu0 0.0
    %1068 = vmatprep.subr.mxu0 0.0
    %1069 = vmatpush1.msra.mxu0 0.0
    %1070 = vmatprep.subr.mxu0 0.0
    %1071 = vmatpush1.msra.mxu0 0.0
    %1072 = vmatprep.subr.mxu0 0.0
    %1073 = vmatpush1.msra.mxu0 0.0
    %1074 = vmatprep.subr.mxu0 0.0
    %1075 = vmatpush1.msra.mxu0 0.0
    %1076 = vmatprep.subr.mxu0 0.0
    %1077 = vmatpush1.msra.mxu0 0.0
    %1078 = vmatprep.subr.mxu0 0.0
    %1079 = vmatpush1.msra.mxu0 0.0
    %1080 = vmatprep.subr.mxu0 0.0
    %1081 = vmatpush1.msra.mxu0 0.0
    %1082 = vmatprep.subr.mxu0 0.0
    %1083 = vmatpush1.msra.mxu0 0.0
    %1084 = vmatprep.subr.mxu0 0.0
    %1085 = vmatpush1.msra.mxu0 0.0
    %1086 = vmatprep.subr.mxu0 0.0
    %1087 = vmatpush1.msra.mxu0 0.0
    %1088 = vmatprep.subr.mxu0 0.0
    %1089 = vmatpush1.msra.mxu0 0.0
    %1090 = vmatprep.subr.mxu0 0.0
    %1091 = vmatpush1.msra.mxu0 0.0
    %1092 = vmatprep.subr.mxu0 0.0
    %1093 = vmatpush1.msra.mxu0 0.0
    %1094 = vmatprep.subr.mxu0 0.0
    %1095 = vmatpush1.msra.mxu0 0.0
    %1096 = vmatprep.subr.mxu0 0.0
    %1097 = vmatpush1.msra.mxu0 0.0
    %1098 = vmatprep.subr.mxu0 0.0
    %1099 = vmatpush1.msra.mxu0 0.0
    %1100 = vmatprep.subr.mxu0 0.0
    %1101 = vmatpush1.msra.mxu0 0.0
    %1102 = vmatprep.subr.mxu0 0.0
    %1103 = vmatpush1.msra.mxu0 0.0
    %1104 = vmatprep.subr.mxu0 0.0
    %1105 = vmatpush1.msra.mxu0 0.0
    %1106 = vmatprep.subr.mxu0 0.0
    %1107 = vmatpush1.msra.mxu0 0.0
    %1108 = vmatprep.subr.mxu0 0.0
    %1109 = vmatpush1.msra.mxu0 0.0
    %1110 = vmatprep.subr.mxu0 0.0
    %1111 = vmatpush1.msra.mxu0 0.0
    %1112 = vmatprep.subr.mxu0 0.0
    %1113 = vmatpush1.msra.mxu0 0.0
    %1114 = vmatprep.subr.mxu0 0.0
    %1115 = vmatpush1.msra.mxu0 0.0
    %1116 = vmatprep.subr.mxu0 0.0
    %1117 = vmatpush1.msra.mxu0 0.0
    %1118 = vmatprep.mubr.f32.mxu0 0.0
    %1119 = vmatmul.mubr.f32.gmra.mrb[0].mxu0 %v912
    %v1120 = vpop.f32.mrb[0].mxu0
    %v1121 = vadd.f32 %v568, %v1120
    %v1122 = vpop.f32.mrb[0].mxu0
    %1123 = vdwg.mxu0
    %v1125 = vrot.slane %v981, 4
    %v1127 = vadd.f32 %v227, %v1125
    %v1128 = vxor.u32 %v1127, 2147483648
    %v1129 = vmul.f32 %v1128, 1.442695
    %v1130 = vpow.pop %v1129
    %v1131 = vadd.f32 %v1130, 1.0
    %v1132 = vrcp.pop %v1131
    %v1133 = vmul.f32 1.0, %v1132
    %v1135 = vrot.slane %v1051, 4
    %v1137 = vadd.f32 %v313, %v1135
    %v1138 = vxor.u32 %v1137, 2147483648
    %v1139 = vmul.f32 %v1138, 1.442695
    %v1140 = vpow.pop %v1139
    %v1141 = vadd.f32 %v1140, 1.0
    %v1142 = vrcp.pop %v1141
    %v1143 = vmul.f32 1.0, %v1142
    %v1145 = vrot.slane %v1121, 4
    %v1147 = vmul.f32 %v1133, %v1145
    %v1148 = vadd.f32 %v399, %v1147
    %v1149 = vtanh.pop %v1148
    %v1150 = vsub.f32 1.0, %v1143
    %v1151 = vmul.f32 %v1150, %v1149
    %v1152 = vrot.slane %v907, 6
    %v1154 = vmul.f32 %v1143, %v1152
    %v1155 = vadd.f32 %v1151, %v1154
    %vm1156 = vcmask 259076
    %1157 = vst.msk [vmem:[#allocation14] sm:$0x30] %vm1156, %v1155
    %v1159 = vrot.slane %v1155, 4
    %v1160 = vsel %vm153, %v1159, 0
    %1162 = vmatprep.subr.mxu0 0.0
    %1163 = vmatpush1.msra.mxu0 %v407
    %1164 = vmatprep.subr.mxu0 0.0
    %1165 = vmatpush1.msra.mxu0 %v408
    %1166 = vmatprep.subr.mxu0 0.0
    %1167 = vmatpush1.msra.mxu0 %v409
    %1168 = vmatprep.subr.mxu0 0.0
    %1169 = vmatpush1.msra.mxu0 %v410
    %1170 = vmatprep.subr.mxu0 0.0
    %1171 = vmatpush1.msra.mxu0 0.0
    %1172 = vmatprep.subr.mxu0 0.0
    %1173 = vmatpush1.msra.mxu0 0.0
    %1174 = vmatprep.subr.mxu0 0.0
    %1175 = vmatpush1.msra.mxu0 0.0
    %1176 = vmatprep.subr.mxu0 0.0
    %1177 = vmatpush1.msra.mxu0 0.0
    %1178 = vmatprep.subr.mxu0 0.0
    %1179 = vmatpush1.msra.mxu0 0.0
    %1180 = vmatprep.subr.mxu0 0.0
    %1181 = vmatpush1.msra.mxu0 0.0
    %1182 = vmatprep.subr.mxu0 0.0
    %1183 = vmatpush1.msra.mxu0 0.0
    %1184 = vmatprep.subr.mxu0 0.0
    %1185 = vmatpush1.msra.mxu0 0.0
    %1186 = vmatprep.subr.mxu0 0.0
    %1187 = vmatpush1.msra.mxu0 0.0
    %1188 = vmatprep.subr.mxu0 0.0
    %1189 = vmatpush1.msra.mxu0 0.0
    %1190 = vmatprep.subr.mxu0 0.0
    %1191 = vmatpush1.msra.mxu0 0.0
    %1192 = vmatprep.subr.mxu0 0.0
    %1193 = vmatpush1.msra.mxu0 0.0
    %1194 = vmatprep.subr.mxu0 0.0
    %1195 = vmatpush1.msra.mxu0 0.0
    %1196 = vmatprep.subr.mxu0 0.0
    %1197 = vmatpush1.msra.mxu0 0.0
    %1198 = vmatprep.subr.mxu0 0.0
    %1199 = vmatpush1.msra.mxu0 0.0
    %1200 = vmatprep.subr.mxu0 0.0
    %1201 = vmatpush1.msra.mxu0 0.0
    %1202 = vmatprep.subr.mxu0 0.0
    %1203 = vmatpush1.msra.mxu0 0.0
    %1204 = vmatprep.subr.mxu0 0.0
    %1205 = vmatpush1.msra.mxu0 0.0
    %1206 = vmatprep.subr.mxu0 0.0
    %1207 = vmatpush1.msra.mxu0 0.0
    %1208 = vmatprep.subr.mxu0 0.0
    %1209 = vmatpush1.msra.mxu0 0.0
    %1210 = vmatprep.subr.mxu0 0.0
    %1211 = vmatpush1.msra.mxu0 0.0
    %1212 = vmatprep.subr.mxu0 0.0
    %1213 = vmatpush1.msra.mxu0 0.0
    %1214 = vmatprep.subr.mxu0 0.0
    %1215 = vmatpush1.msra.mxu0 0.0
    %1216 = vmatprep.subr.mxu0 0.0
    %1217 = vmatpush1.msra.mxu0 0.0
    %1218 = vmatprep.subr.mxu0 0.0
    %1219 = vmatpush1.msra.mxu0 0.0
    %1220 = vmatprep.subr.mxu0 0.0
    %1221 = vmatpush1.msra.mxu0 0.0
    %1222 = vmatprep.subr.mxu0 0.0
    %1223 = vmatpush1.msra.mxu0 0.0
    %1224 = vmatprep.subr.mxu0 0.0
    %1225 = vmatpush1.msra.mxu0 0.0
    %1226 = vmatprep.mubr.f32.mxu0 0.0
    %1227 = vmatmul.mubr.f32.gmra.mrb[0].mxu0 %v1160
    %v1228 = vpop.f32.mrb[0].mxu0
    %v1229 = vadd.f32 0.0, %v1228
    %v1230 = vpop.f32.mrb[0].mxu0
    %1231 = vdwg.mxu0
    %1232 = vmatprep.subr.mxu0 0.0
    %1233 = vmatpush1.msra.mxu0 %v411
    %1234 = vmatprep.subr.mxu0 0.0
    %1235 = vmatpush1.msra.mxu0 %v412
    %1236 = vmatprep.subr.mxu0 0.0
    %1237 = vmatpush1.msra.mxu0 %v413
    %1238 = vmatprep.subr.mxu0 0.0
    %1239 = vmatpush1.msra.mxu0 %v414
    %1240 = vmatprep.subr.mxu0 0.0
    %1241 = vmatpush1.msra.mxu0 0.0
    %1242 = vmatprep.subr.mxu0 0.0
    %1243 = vmatpush1.msra.mxu0 0.0
    %1244 = vmatprep.subr.mxu0 0.0
    %1245 = vmatpush1.msra.mxu0 0.0
    %1246 = vmatprep.subr.mxu0 0.0
    %1247 = vmatpush1.msra.mxu0 0.0
    %1248 = vmatprep.subr.mxu0 0.0
    %1249 = vmatpush1.msra.mxu0 0.0
    %1250 = vmatprep.subr.mxu0 0.0
    %1251 = vmatpush1.msra.mxu0 0.0
    %1252 = vmatprep.subr.mxu0 0.0
    %1253 = vmatpush1.msra.mxu0 0.0
    %1254 = vmatprep.subr.mxu0 0.0
    %1255 = vmatpush1.msra.mxu0 0.0
    %1256 = vmatprep.subr.mxu0 0.0
    %1257 = vmatpush1.msra.mxu0 0.0
    %1258 = vmatprep.subr.mxu0 0.0
    %1259 = vmatpush1.msra.mxu0 0.0
    %1260 = vmatprep.subr.mxu0 0.0
    %1261 = vmatpush1.msra.mxu0 0.0
    %1262 = vmatprep.subr.mxu0 0.0
    %1263 = vmatpush1.msra.mxu0 0.0
    %1264 = vmatprep.subr.mxu0 0.0
    %1265 = vmatpush1.msra.mxu0 0.0
    %1266 = vmatprep.subr.mxu0 0.0
    %1267 = vmatpush1.msra.mxu0 0.0
    %1268 = vmatprep.subr.mxu0 0.0
    %1269 = vmatpush1.msra.mxu0 0.0
    %1270 = vmatprep.subr.mxu0 0.0
    %1271 = vmatpush1.msra.mxu0 0.0
    %1272 = vmatprep.subr.mxu0 0.0
    %1273 = vmatpush1.msra.mxu0 0.0
    %1274 = vmatprep.subr.mxu0 0.0
    %1275 = vmatpush1.msra.mxu0 0.0
    %1276 = vmatprep.subr.mxu0 0.0
    %1277 = vmatpush1.msra.mxu0 0.0
    %1278 = vmatprep.subr.mxu0 0.0
    %1279 = vmatpush1.msra.mxu0 0.0
    %1280 = vmatprep.subr.mxu0 0.0
    %1281 = vmatpush1.msra.mxu0 0.0
    %1282 = vmatprep.subr.mxu0 0.0
    %1283 = vmatpush1.msra.mxu0 0.0
    %1284 = vmatprep.subr.mxu0 0.0
    %1285 = vmatpush1.msra.mxu0 0.0
    %1286 = vmatprep.subr.mxu0 0.0
    %1287 = vmatpush1.msra.mxu0 0.0
    %1288 = vmatprep.subr.mxu0 0.0
    %1289 = vmatpush1.msra.mxu0 0.0
    %1290 = vmatprep.subr.mxu0 0.0
    %1291 = vmatpush1.msra.mxu0 0.0
    %1292 = vmatprep.subr.mxu0 0.0
    %1293 = vmatpush1.msra.mxu0 0.0
    %1294 = vmatprep.subr.mxu0 0.0
    %1295 = vmatpush1.msra.mxu0 0.0
    %1296 = vmatprep.mubr.f32.mxu0 0.0
    %1297 = vmatmul.mubr.f32.gmra.mrb[0].mxu0 %v1160
    %v1298 = vpop.f32.mrb[0].mxu0
    %v1299 = vadd.f32 0.0, %v1298
    %v1300 = vpop.f32.mrb[0].mxu0
    %1301 = vdwg.mxu0
    %1302 = vmatprep.subr.mxu0 0.0
    %1303 = vmatpush1.msra.mxu0 %v415
    %1304 = vmatprep.subr.mxu0 0.0
    %1305 = vmatpush1.msra.mxu0 %v416
    %1306 = vmatprep.subr.mxu0 0.0
    %1307 = vmatpush1.msra.mxu0 %v417
    %1308 = vmatprep.subr.mxu0 0.0
    %1309 = vmatpush1.msra.mxu0 %v418
    %1310 = vmatprep.subr.mxu0 0.0
    %1311 = vmatpush1.msra.mxu0 0.0
    %1312 = vmatprep.subr.mxu0 0.0
    %1313 = vmatpush1.msra.mxu0 0.0
    %1314 = vmatprep.subr.mxu0 0.0
    %1315 = vmatpush1.msra.mxu0 0.0
    %1316 = vmatprep.subr.mxu0 0.0
    %1317 = vmatpush1.msra.mxu0 0.0
    %1318 = vmatprep.subr.mxu0 0.0
    %1319 = vmatpush1.msra.mxu0 0.0
    %1320 = vmatprep.subr.mxu0 0.0
    %1321 = vmatpush1.msra.mxu0 0.0
    %1322 = vmatprep.subr.mxu0 0.0
    %1323 = vmatpush1.msra.mxu0 0.0
    %1324 = vmatprep.subr.mxu0 0.0
    %1325 = vmatpush1.msra.mxu0 0.0
    %1326 = vmatprep.subr.mxu0 0.0
    %1327 = vmatpush1.msra.mxu0 0.0
    %1328 = vmatprep.subr.mxu0 0.0
    %1329 = vmatpush1.msra.mxu0 0.0
    %1330 = vmatprep.subr.mxu0 0.0
    %1331 = vmatpush1.msra.mxu0 0.0
    %1332 = vmatprep.subr.mxu0 0.0
    %1333 = vmatpush1.msra.mxu0 0.0
    %1334 = vmatprep.subr.mxu0 0.0
    %1335 = vmatpush1.msra.mxu0 0.0
    %1336 = vmatprep.subr.mxu0 0.0
    %1337 = vmatpush1.msra.mxu0 0.0
    %1338 = vmatprep.subr.mxu0 0.0
    %1339 = vmatpush1.msra.mxu0 0.0
    %1340 = vmatprep.subr.mxu0 0.0
    %1341 = vmatpush1.msra.mxu0 0.0
    %1342 = vmatprep.subr.mxu0 0.0
    %1343 = vmatpush1.msra.mxu0 0.0
    %1344 = vmatprep.subr.mxu0 0.0
    %1345 = vmatpush1.msra.mxu0 0.0
    %1346 = vmatprep.subr.mxu0 0.0
    %1347 = vmatpush1.msra.mxu0 0.0
    %1348 = vmatprep.subr.mxu0 0.0
    %1349 = vmatpush1.msra.mxu0 0.0
    %1350 = vmatprep.subr.mxu0 0.0
    %1351 = vmatpush1.msra.mxu0 0.0
    %1352 = vmatprep.subr.mxu0 0.0
    %1353 = vmatpush1.msra.mxu0 0.0
    %1354 = vmatprep.subr.mxu0 0.0
    %1355 = vmatpush1.msra.mxu0 0.0
    %1356 = vmatprep.subr.mxu0 0.0
    %1357 = vmatpush1.msra.mxu0 0.0
    %1358 = vmatprep.subr.mxu0 0.0
    %1359 = vmatpush1.msra.mxu0 0.0
    %1360 = vmatprep.subr.mxu0 0.0
    %1361 = vmatpush1.msra.mxu0 0.0
    %1362 = vmatprep.subr.mxu0 0.0
    %1363 = vmatpush1.msra.mxu0 0.0
    %1364 = vmatprep.subr.mxu0 0.0
    %1365 = vmatpush1.msra.mxu0 0.0
    %1366 = vmatprep.mubr.f32.mxu0 0.0
    %1367 = vmatmul.mubr.f32.gmra.mrb[0].mxu0 %v1160
    %v1368 = vpop.f32.mrb[0].mxu0
    %v1369 = vadd.f32 %v568, %v1368
    %v1370 = vpop.f32.mrb[0].mxu0
    %1371 = vdwg.mxu0
    %v1373 = vrot.slane %v1229, 2
    %v1375 = vadd.f32 %v227, %v1373
    %v1376 = vxor.u32 %v1375, 2147483648
    %v1377 = vmul.f32 %v1376, 1.442695
    %v1378 = vpow.pop %v1377
    %v1379 = vadd.f32 %v1378, 1.0
    %v1380 = vrcp.pop %v1379
    %v1381 = vmul.f32 1.0, %v1380
    %v1383 = vrot.slane %v1299, 2
    %v1385 = vadd.f32 %v313, %v1383
    %v1386 = vxor.u32 %v1385, 2147483648
    %v1387 = vmul.f32 %v1386, 1.442695
    %v1388 = vpow.pop %v1387
    %v1389 = vadd.f32 %v1388, 1.0
    %v1390 = vrcp.pop %v1389
    %v1391 = vmul.f32 1.0, %v1390
    %v1393 = vrot.slane %v1369, 2
    %v1395 = vmul.f32 %v1381, %v1393
    %v1396 = vadd.f32 %v399, %v1395
    %v1397 = vtanh.pop %v1396
    %v1398 = vsub.f32 1.0, %v1391
    %v1399 = vmul.f32 %v1398, %v1397
    %v1400 = vrot.slane %v1155, 6
    %v1402 = vmul.f32 %v1391, %v1400
    %v1403 = vadd.f32 %v1399, %v1402
    %vm1404 = vcmask 261126
    %1405 = vst.msk [vmem:[#allocation14] sm:$0xc0] %vm1404, %v1403
    %v1407 = vrot.slane %v1403, 6
    %v1408 = vsel %vm153, %v1407, 0
    %1410 = vmatprep.subr.mxu0 0.0
    %1411 = vmatpush1.msra.mxu0 %v407
    %1412 = vmatprep.subr.mxu0 0.0
    %1413 = vmatpush1.msra.mxu0 %v408
    %1414 = vmatprep.subr.mxu0 0.0
    %1415 = vmatpush1.msra.mxu0 %v409
    %1416 = vmatprep.subr.mxu0 0.0
    %1417 = vmatpush1.msra.mxu0 %v410
    %1418 = vmatprep.subr.mxu0 0.0
    %1419 = vmatpush1.msra.mxu0 0.0
    %1420 = vmatprep.subr.mxu0 0.0
    %1421 = vmatpush1.msra.mxu0 0.0
    %1422 = vmatprep.subr.mxu0 0.0
    %1423 = vmatpush1.msra.mxu0 0.0
    %1424 = vmatprep.subr.mxu0 0.0
    %1425 = vmatpush1.msra.mxu0 0.0
    %1426 = vmatprep.subr.mxu0 0.0
    %1427 = vmatpush1.msra.mxu0 0.0
    %1428 = vmatprep.subr.mxu0 0.0
    %1429 = vmatpush1.msra.mxu0 0.0
    %1430 = vmatprep.subr.mxu0 0.0
    %1431 = vmatpush1.msra.mxu0 0.0
    %1432 = vmatprep.subr.mxu0 0.0
    %1433 = vmatpush1.msra.mxu0 0.0
    %1434 = vmatprep.subr.mxu0 0.0
    %1435 = vmatpush1.msra.mxu0 0.0
    %1436 = vmatprep.subr.mxu0 0.0
    %1437 = vmatpush1.msra.mxu0 0.0
    %1438 = vmatprep.subr.mxu0 0.0
    %1439 = vmatpush1.msra.mxu0 0.0
    %1440 = vmatprep.subr.mxu0 0.0
    %1441 = vmatpush1.msra.mxu0 0.0
    %1442 = vmatprep.subr.mxu0 0.0
    %1443 = vmatpush1.msra.mxu0 0.0
    %1444 = vmatprep.subr.mxu0 0.0
    %1445 = vmatpush1.msra.mxu0 0.0
    %1446 = vmatprep.subr.mxu0 0.0
    %1447 = vmatpush1.msra.mxu0 0.0
    %1448 = vmatprep.subr.mxu0 0.0
    %1449 = vmatpush1.msra.mxu0 0.0
    %1450 = vmatprep.subr.mxu0 0.0
    %1451 = vmatpush1.msra.mxu0 0.0
    %1452 = vmatprep.subr.mxu0 0.0
    %1453 = vmatpush1.msra.mxu0 0.0
    %1454 = vmatprep.subr.mxu0 0.0
    %1455 = vmatpush1.msra.mxu0 0.0
    %1456 = vmatprep.subr.mxu0 0.0
    %1457 = vmatpush1.msra.mxu0 0.0
    %1458 = vmatprep.subr.mxu0 0.0
    %1459 = vmatpush1.msra.mxu0 0.0
    %1460 = vmatprep.subr.mxu0 0.0
    %1461 = vmatpush1.msra.mxu0 0.0
    %1462 = vmatprep.subr.mxu0 0.0
    %1463 = vmatpush1.msra.mxu0 0.0
    %1464 = vmatprep.subr.mxu0 0.0
    %1465 = vmatpush1.msra.mxu0 0.0
    %1466 = vmatprep.subr.mxu0 0.0
    %1467 = vmatpush1.msra.mxu0 0.0
    %1468 = vmatprep.subr.mxu0 0.0
    %1469 = vmatpush1.msra.mxu0 0.0
    %1470 = vmatprep.subr.mxu0 0.0
    %1471 = vmatpush1.msra.mxu0 0.0
    %1472 = vmatprep.subr.mxu0 0.0
    %1473 = vmatpush1.msra.mxu0 0.0
    %1474 = vmatprep.mubr.f32.mxu0 0.0
    %1475 = vmatmul.mubr.f32.gmra.mrb[0].mxu0 %v1408
    %v1476 = vpop.f32.mrb[0].mxu0
    %v1477 = vadd.f32 0.0, %v1476
    %v1478 = vpop.f32.mrb[0].mxu0
    %1479 = vdwg.mxu0
    %1480 = vmatprep.subr.mxu0 0.0
    %1481 = vmatpush1.msra.mxu0 %v411
    %1482 = vmatprep.subr.mxu0 0.0
    %1483 = vmatpush1.msra.mxu0 %v412
    %1484 = vmatprep.subr.mxu0 0.0
    %1485 = vmatpush1.msra.mxu0 %v413
    %1486 = vmatprep.subr.mxu0 0.0
    %1487 = vmatpush1.msra.mxu0 %v414
    %1488 = vmatprep.subr.mxu0 0.0
    %1489 = vmatpush1.msra.mxu0 0.0
    %1490 = vmatprep.subr.mxu0 0.0
    %1491 = vmatpush1.msra.mxu0 0.0
    %1492 = vmatprep.subr.mxu0 0.0
    %1493 = vmatpush1.msra.mxu0 0.0
    %1494 = vmatprep.subr.mxu0 0.0
    %1495 = vmatpush1.msra.mxu0 0.0
    %1496 = vmatprep.subr.mxu0 0.0
    %1497 = vmatpush1.msra.mxu0 0.0
    %1498 = vmatprep.subr.mxu0 0.0
    %1499 = vmatpush1.msra.mxu0 0.0
    %1500 = vmatprep.subr.mxu0 0.0
    %1501 = vmatpush1.msra.mxu0 0.0
    %1502 = vmatprep.subr.mxu0 0.0
    %1503 = vmatpush1.msra.mxu0 0.0
    %1504 = vmatprep.subr.mxu0 0.0
    %1505 = vmatpush1.msra.mxu0 0.0
    %1506 = vmatprep.subr.mxu0 0.0
    %1507 = vmatpush1.msra.mxu0 0.0
    %1508 = vmatprep.subr.mxu0 0.0
    %1509 = vmatpush1.msra.mxu0 0.0
    %1510 = vmatprep.subr.mxu0 0.0
    %1511 = vmatpush1.msra.mxu0 0.0
    %1512 = vmatprep.subr.mxu0 0.0
    %1513 = vmatpush1.msra.mxu0 0.0
    %1514 = vmatprep.subr.mxu0 0.0
    %1515 = vmatpush1.msra.mxu0 0.0
    %1516 = vmatprep.subr.mxu0 0.0
    %1517 = vmatpush1.msra.mxu0 0.0
    %1518 = vmatprep.subr.mxu0 0.0
    %1519 = vmatpush1.msra.mxu0 0.0
    %1520 = vmatprep.subr.mxu0 0.0
    %1521 = vmatpush1.msra.mxu0 0.0
    %1522 = vmatprep.subr.mxu0 0.0
    %1523 = vmatpush1.msra.mxu0 0.0
    %1524 = vmatprep.subr.mxu0 0.0
    %1525 = vmatpush1.msra.mxu0 0.0
    %1526 = vmatprep.subr.mxu0 0.0
    %1527 = vmatpush1.msra.mxu0 0.0
    %1528 = vmatprep.subr.mxu0 0.0
    %1529 = vmatpush1.msra.mxu0 0.0
    %1530 = vmatprep.subr.mxu0 0.0
    %1531 = vmatpush1.msra.mxu0 0.0
    %1532 = vmatprep.subr.mxu0 0.0
    %1533 = vmatpush1.msra.mxu0 0.0
    %1534 = vmatprep.subr.mxu0 0.0
    %1535 = vmatpush1.msra.mxu0 0.0
    %1536 = vmatprep.subr.mxu0 0.0
    %1537 = vmatpush1.msra.mxu0 0.0
    %1538 = vmatprep.subr.mxu0 0.0
    %1539 = vmatpush1.msra.mxu0 0.0
    %1540 = vmatprep.subr.mxu0 0.0
    %1541 = vmatpush1.msra.mxu0 0.0
    %1542 = vmatprep.subr.mxu0 0.0
    %1543 = vmatpush1.msra.mxu0 0.0
    %1544 = vmatprep.mubr.f32.mxu0 0.0
    %1545 = vmatmul.mubr.f32.gmra.mrb[0].mxu0 %v1408
    %v1546 = vpop.f32.mrb[0].mxu0
    %v1547 = vadd.f32 0.0, %v1546
    %v1548 = vpop.f32.mrb[0].mxu0
    %1549 = vdwg.mxu0
    %1550 = vmatprep.subr.mxu0 0.0
    %1551 = vmatpush1.msra.mxu0 %v415
    %1552 = vmatprep.subr.mxu0 0.0
    %1553 = vmatpush1.msra.mxu0 %v416
    %1554 = vmatprep.subr.mxu0 0.0
    %1555 = vmatpush1.msra.mxu0 %v417
    %1556 = vmatprep.subr.mxu0 0.0
    %1557 = vmatpush1.msra.mxu0 %v418
    %1558 = vmatprep.subr.mxu0 0.0
    %1559 = vmatpush1.msra.mxu0 0.0
    %1560 = vmatprep.subr.mxu0 0.0
    %1561 = vmatpush1.msra.mxu0 0.0
    %1562 = vmatprep.subr.mxu0 0.0
    %1563 = vmatpush1.msra.mxu0 0.0
    %1564 = vmatprep.subr.mxu0 0.0
    %1565 = vmatpush1.msra.mxu0 0.0
    %1566 = vmatprep.subr.mxu0 0.0
    %1567 = vmatpush1.msra.mxu0 0.0
    %1568 = vmatprep.subr.mxu0 0.0
    %1569 = vmatpush1.msra.mxu0 0.0
    %1570 = vmatprep.subr.mxu0 0.0
    %1571 = vmatpush1.msra.mxu0 0.0
    %1572 = vmatprep.subr.mxu0 0.0
    %1573 = vmatpush1.msra.mxu0 0.0
    %1574 = vmatprep.subr.mxu0 0.0
    %1575 = vmatpush1.msra.mxu0 0.0
    %1576 = vmatprep.subr.mxu0 0.0
    %1577 = vmatpush1.msra.mxu0 0.0
    %1578 = vmatprep.subr.mxu0 0.0
    %1579 = vmatpush1.msra.mxu0 0.0
    %1580 = vmatprep.subr.mxu0 0.0
    %1581 = vmatpush1.msra.mxu0 0.0
    %1582 = vmatprep.subr.mxu0 0.0
    %1583 = vmatpush1.msra.mxu0 0.0
    %1584 = vmatprep.subr.mxu0 0.0
    %1585 = vmatpush1.msra.mxu0 0.0
    %1586 = vmatprep.subr.mxu0 0.0
    %1587 = vmatpush1.msra.mxu0 0.0
    %1588 = vmatprep.subr.mxu0 0.0
    %1589 = vmatpush1.msra.mxu0 0.0
    %1590 = vmatprep.subr.mxu0 0.0
    %1591 = vmatpush1.msra.mxu0 0.0
    %1592 = vmatprep.subr.mxu0 0.0
    %1593 = vmatpush1.msra.mxu0 0.0
    %1594 = vmatprep.subr.mxu0 0.0
    %1595 = vmatpush1.msra.mxu0 0.0
    %1596 = vmatprep.subr.mxu0 0.0
    %1597 = vmatpush1.msra.mxu0 0.0
    %1598 = vmatprep.subr.mxu0 0.0
    %1599 = vmatpush1.msra.mxu0 0.0
    %1600 = vmatprep.subr.mxu0 0.0
    %1601 = vmatpush1.msra.mxu0 0.0
    %1602 = vmatprep.subr.mxu0 0.0
    %1603 = vmatpush1.msra.mxu0 0.0
    %1604 = vmatprep.subr.mxu0 0.0
    %1605 = vmatpush1.msra.mxu0 0.0
    %1606 = vmatprep.subr.mxu0 0.0
    %1607 = vmatpush1.msra.mxu0 0.0
    %1608 = vmatprep.subr.mxu0 0.0
    %1609 = vmatpush1.msra.mxu0 0.0
    %1610 = vmatprep.subr.mxu0 0.0
    %1611 = vmatpush1.msra.mxu0 0.0
    %1612 = vmatprep.subr.mxu0 0.0
    %1613 = vmatpush1.msra.mxu0 0.0
    %1614 = vmatprep.mubr.f32.mxu0 0.0
    %1615 = vmatmul.mubr.f32.gmra.mrb[0].mxu0 %v1408
    %v1616 = vpop.f32.mrb[0].mxu0
    %v1617 = vadd.f32 %v568, %v1616
    %v1618 = vpop.f32.mrb[0].mxu0
    %1619 = vdwg.mxu0
    %v1620 = vadd.f32 %v232, %v1477
    %v1621 = vxor.u32 %v1620, 2147483648
    %v1622 = vmul.f32 %v1621, 1.442695
    %v1623 = vpow.pop %v1622
    %v1624 = vadd.f32 %v1623, 1.0
    %v1625 = vrcp.pop %v1624
    %v1626 = vmul.f32 1.0, %v1625
    %v1627 = vadd.f32 %v318, %v1547
    %v1628 = vxor.u32 %v1627, 2147483648
    %v1629 = vmul.f32 %v1628, 1.442695
    %v1630 = vpow.pop %v1629
    %v1631 = vadd.f32 %v1630, 1.0
    %v1632 = vrcp.pop %v1631
    %v1633 = vmul.f32 1.0, %v1632
    %v1634 = vmul.f32 %v1626, %v1617
    %v1635 = vadd.f32 %v404, %v1634
    %v1636 = vtanh.pop %v1635
    %v1637 = vsub.f32 1.0, %v1633
    %v1638 = vmul.f32 %v1637, %v1636
    %v1640 = vmul.f32 %v1633, %v1407
    %v1641 = vadd.f32 %v1638, %v1640
    %1642 = vst.msk [vmem:[#allocation14 + $0x8] sm:$0x3] %vm661, %v1641
    %v1644 = vsel %vm153, %v1641, 0
    %1646 = vmatprep.subr.mxu0 0.0
    %1647 = vmatpush1.msra.mxu0 %v407
    %1648 = vmatprep.subr.mxu0 0.0
    %1649 = vmatpush1.msra.mxu0 %v408
    %1650 = vmatprep.subr.mxu0 0.0
    %1651 = vmatpush1.msra.mxu0 %v409
    %1652 = vmatprep.subr.mxu0 0.0
    %1653 = vmatpush1.msra.mxu0 %v410
    %1654 = vmatprep.subr.mxu0 0.0
    %1655 = vmatpush1.msra.mxu0 0.0
    %1656 = vmatprep.subr.mxu0 0.0
    %1657 = vmatpush1.msra.mxu0 0.0
    %1658 = vmatprep.subr.mxu0 0.0
    %1659 = vmatpush1.msra.mxu0 0.0
    %1660 = vmatprep.subr.mxu0 0.0
    %1661 = vmatpush1.msra.mxu0 0.0
    %1662 = vmatprep.subr.mxu0 0.0
    %1663 = vmatpush1.msra.mxu0 0.0
    %1664 = vmatprep.subr.mxu0 0.0
    %1665 = vmatpush1.msra.mxu0 0.0
    %1666 = vmatprep.subr.mxu0 0.0
    %1667 = vmatpush1.msra.mxu0 0.0
    %1668 = vmatprep.subr.mxu0 0.0
    %1669 = vmatpush1.msra.mxu0 0.0
    %1670 = vmatprep.subr.mxu0 0.0
    %1671 = vmatpush1.msra.mxu0 0.0
    %1672 = vmatprep.subr.mxu0 0.0
    %1673 = vmatpush1.msra.mxu0 0.0
    %1674 = vmatprep.subr.mxu0 0.0
    %1675 = vmatpush1.msra.mxu0 0.0
    %1676 = vmatprep.subr.mxu0 0.0
    %1677 = vmatpush1.msra.mxu0 0.0
    %1678 = vmatprep.subr.mxu0 0.0
    %1679 = vmatpush1.msra.mxu0 0.0
    %1680 = vmatprep.subr.mxu0 0.0
    %1681 = vmatpush1.msra.mxu0 0.0
    %1682 = vmatprep.subr.mxu0 0.0
    %1683 = vmatpush1.msra.mxu0 0.0
    %1684 = vmatprep.subr.mxu0 0.0
    %1685 = vmatpush1.msra.mxu0 0.0
    %1686 = vmatprep.subr.mxu0 0.0
    %1687 = vmatpush1.msra.mxu0 0.0
    %1688 = vmatprep.subr.mxu0 0.0
    %1689 = vmatpush1.msra.mxu0 0.0
    %1690 = vmatprep.subr.mxu0 0.0
    %1691 = vmatpush1.msra.mxu0 0.0
    %1692 = vmatprep.subr.mxu0 0.0
    %1693 = vmatpush1.msra.mxu0 0.0
    %1694 = vmatprep.subr.mxu0 0.0
    %1695 = vmatpush1.msra.mxu0 0.0
    %1696 = vmatprep.subr.mxu0 0.0
    %1697 = vmatpush1.msra.mxu0 0.0
    %1698 = vmatprep.subr.mxu0 0.0
    %1699 = vmatpush1.msra.mxu0 0.0
    %1700 = vmatprep.subr.mxu0 0.0
    %1701 = vmatpush1.msra.mxu0 0.0
    %1702 = vmatprep.subr.mxu0 0.0
    %1703 = vmatpush1.msra.mxu0 0.0
    %1704 = vmatprep.subr.mxu0 0.0
    %1705 = vmatpush1.msra.mxu0 0.0
    %1706 = vmatprep.subr.mxu0 0.0
    %1707 = vmatpush1.msra.mxu0 0.0
    %1708 = vmatprep.subr.mxu0 0.0
    %1709 = vmatpush1.msra.mxu0 0.0
    %1710 = vmatprep.mubr.f32.mxu0 0.0
    %1711 = vmatmul.mubr.f32.gmra.mrb[0].mxu0 %v1644
    %v1712 = vpop.f32.mrb[0].mxu0
    %v1713 = vadd.f32 0.0, %v1712
    %v1714 = vpop.f32.mrb[0].mxu0
    %1715 = vdwg.mxu0
    %1716 = vmatprep.subr.mxu0 0.0
    %1717 = vmatpush1.msra.mxu0 %v411
    %1718 = vmatprep.subr.mxu0 0.0
    %1719 = vmatpush1.msra.mxu0 %v412
    %1720 = vmatprep.subr.mxu0 0.0
    %1721 = vmatpush1.msra.mxu0 %v413
    %1722 = vmatprep.subr.mxu0 0.0
    %1723 = vmatpush1.msra.mxu0 %v414
    %1724 = vmatprep.subr.mxu0 0.0
    %1725 = vmatpush1.msra.mxu0 0.0
    %1726 = vmatprep.subr.mxu0 0.0
    %1727 = vmatpush1.msra.mxu0 0.0
    %1728 = vmatprep.subr.mxu0 0.0
    %1729 = vmatpush1.msra.mxu0 0.0
    %1730 = vmatprep.subr.mxu0 0.0
    %1731 = vmatpush1.msra.mxu0 0.0
    %1732 = vmatprep.subr.mxu0 0.0
    %1733 = vmatpush1.msra.mxu0 0.0
    %1734 = vmatprep.subr.mxu0 0.0
    %1735 = vmatpush1.msra.mxu0 0.0
    %1736 = vmatprep.subr.mxu0 0.0
    %1737 = vmatpush1.msra.mxu0 0.0
    %1738 = vmatprep.subr.mxu0 0.0
    %1739 = vmatpush1.msra.mxu0 0.0
    %1740 = vmatprep.subr.mxu0 0.0
    %1741 = vmatpush1.msra.mxu0 0.0
    %1742 = vmatprep.subr.mxu0 0.0
    %1743 = vmatpush1.msra.mxu0 0.0
    %1744 = vmatprep.subr.mxu0 0.0
    %1745 = vmatpush1.msra.mxu0 0.0
    %1746 = vmatprep.subr.mxu0 0.0
    %1747 = vmatpush1.msra.mxu0 0.0
    %1748 = vmatprep.subr.mxu0 0.0
    %1749 = vmatpush1.msra.mxu0 0.0
    %1750 = vmatprep.subr.mxu0 0.0
    %1751 = vmatpush1.msra.mxu0 0.0
    %1752 = vmatprep.subr.mxu0 0.0
    %1753 = vmatpush1.msra.mxu0 0.0
    %1754 = vmatprep.subr.mxu0 0.0
    %1755 = vmatpush1.msra.mxu0 0.0
    %1756 = vmatprep.subr.mxu0 0.0
    %1757 = vmatpush1.msra.mxu0 0.0
    %1758 = vmatprep.subr.mxu0 0.0
    %1759 = vmatpush1.msra.mxu0 0.0
    %1760 = vmatprep.subr.mxu0 0.0
    %1761 = vmatpush1.msra.mxu0 0.0
    %1762 = vmatprep.subr.mxu0 0.0
    %1763 = vmatpush1.msra.mxu0 0.0
    %1764 = vmatprep.subr.mxu0 0.0
    %1765 = vmatpush1.msra.mxu0 0.0
    %1766 = vmatprep.subr.mxu0 0.0
    %1767 = vmatpush1.msra.mxu0 0.0
    %1768 = vmatprep.subr.mxu0 0.0
    %1769 = vmatpush1.msra.mxu0 0.0
    %1770 = vmatprep.subr.mxu0 0.0
    %1771 = vmatpush1.msra.mxu0 0.0
    %1772 = vmatprep.subr.mxu0 0.0
    %1773 = vmatpush1.msra.mxu0 0.0
    %1774 = vmatprep.subr.mxu0 0.0
    %1775 = vmatpush1.msra.mxu0 0.0
    %1776 = vmatprep.subr.mxu0 0.0
    %1777 = vmatpush1.msra.mxu0 0.0
    %1778 = vmatprep.subr.mxu0 0.0
    %1779 = vmatpush1.msra.mxu0 0.0
    %1780 = vmatprep.mubr.f32.mxu0 0.0
    %1781 = vmatmul.mubr.f32.gmra.mrb[0].mxu0 %v1644
    %v1782 = vpop.f32.mrb[0].mxu0
    %v1783 = vadd.f32 0.0, %v1782
    %v1784 = vpop.f32.mrb[0].mxu0
    %1785 = vdwg.mxu0
    %1786 = vmatprep.subr.mxu0 0.0
    %1787 = vmatpush1.msra.mxu0 %v415
    %1788 = vmatprep.subr.mxu0 0.0
    %1789 = vmatpush1.msra.mxu0 %v416
    %1790 = vmatprep.subr.mxu0 0.0
    %1791 = vmatpush1.msra.mxu0 %v417
    %1792 = vmatprep.subr.mxu0 0.0
    %1793 = vmatpush1.msra.mxu0 %v418
    %1794 = vmatprep.subr.mxu0 0.0
    %1795 = vmatpush1.msra.mxu0 0.0
    %1796 = vmatprep.subr.mxu0 0.0
    %1797 = vmatpush1.msra.mxu0 0.0
    %1798 = vmatprep.subr.mxu0 0.0
    %1799 = vmatpush1.msra.mxu0 0.0
    %1800 = vmatprep.subr.mxu0 0.0
    %1801 = vmatpush1.msra.mxu0 0.0
    %1802 = vmatprep.subr.mxu0 0.0
    %1803 = vmatpush1.msra.mxu0 0.0
    %1804 = vmatprep.subr.mxu0 0.0
    %1805 = vmatpush1.msra.mxu0 0.0
    %1806 = vmatprep.subr.mxu0 0.0
    %1807 = vmatpush1.msra.mxu0 0.0
    %1808 = vmatprep.subr.mxu0 0.0
    %1809 = vmatpush1.msra.mxu0 0.0
    %1810 = vmatprep.subr.mxu0 0.0
    %1811 = vmatpush1.msra.mxu0 0.0
    %1812 = vmatprep.subr.mxu0 0.0
    %1813 = vmatpush1.msra.mxu0 0.0
    %1814 = vmatprep.subr.mxu0 0.0
    %1815 = vmatpush1.msra.mxu0 0.0
    %1816 = vmatprep.subr.mxu0 0.0
    %1817 = vmatpush1.msra.mxu0 0.0
    %1818 = vmatprep.subr.mxu0 0.0
    %1819 = vmatpush1.msra.mxu0 0.0
    %1820 = vmatprep.subr.mxu0 0.0
    %1821 = vmatpush1.msra.mxu0 0.0
    %1822 = vmatprep.subr.mxu0 0.0
    %1823 = vmatpush1.msra.mxu0 0.0
    %1824 = vmatprep.subr.mxu0 0.0
    %1825 = vmatpush1.msra.mxu0 0.0
    %1826 = vmatprep.subr.mxu0 0.0
    %1827 = vmatpush1.msra.mxu0 0.0
    %1828 = vmatprep.subr.mxu0 0.0
    %1829 = vmatpush1.msra.mxu0 0.0
    %1830 = vmatprep.subr.mxu0 0.0
    %1831 = vmatpush1.msra.mxu0 0.0
    %1832 = vmatprep.subr.mxu0 0.0
    %1833 = vmatpush1.msra.mxu0 0.0
    %1834 = vmatprep.subr.mxu0 0.0
    %1835 = vmatpush1.msra.mxu0 0.0
    %1836 = vmatprep.subr.mxu0 0.0
    %1837 = vmatpush1.msra.mxu0 0.0
    %1838 = vmatprep.subr.mxu0 0.0
    %1839 = vmatpush1.msra.mxu0 0.0
    %1840 = vmatprep.subr.mxu0 0.0
    %1841 = vmatpush1.msra.mxu0 0.0
    %1842 = vmatprep.subr.mxu0 0.0
    %1843 = vmatpush1.msra.mxu0 0.0
    %1844 = vmatprep.subr.mxu0 0.0
    %1845 = vmatpush1.msra.mxu0 0.0
    %1846 = vmatprep.subr.mxu0 0.0
    %1847 = vmatpush1.msra.mxu0 0.0
    %1848 = vmatprep.subr.mxu0 0.0
    %1849 = vmatpush1.msra.mxu0 0.0
    %1850 = vmatprep.mubr.f32.mxu0 0.0
    %1851 = vmatmul.mubr.f32.gmra.mrb[0].mxu0 %v1644
    %v1852 = vpop.f32.mrb[0].mxu0
    %v1853 = vadd.f32 %v568, %v1852
    %v1854 = vpop.f32.mrb[0].mxu0
    %1855 = vdwg.mxu0
    %v1857 = vrot.slane %v1713, 6
    %v1859 = vadd.f32 %v232, %v1857
    %v1860 = vxor.u32 %v1859, 2147483648
    %v1861 = vmul.f32 %v1860, 1.442695
    %v1862 = vpow.pop %v1861
    %v1863 = vadd.f32 %v1862, 1.0
    %v1864 = vrcp.pop %v1863
    %v1865 = vmul.f32 1.0, %v1864
    %v1867 = vrot.slane %v1783, 6
    %v1869 = vadd.f32 %v318, %v1867
    %v1870 = vxor.u32 %v1869, 2147483648
    %v1871 = vmul.f32 %v1870, 1.442695
    %v1872 = vpow.pop %v1871
    %v1873 = vadd.f32 %v1872, 1.0
    %v1874 = vrcp.pop %v1873
    %v1875 = vmul.f32 1.0, %v1874
    %v1877 = vrot.slane %v1853, 6
    %v1879 = vmul.f32 %v1865, %v1877
    %v1880 = vadd.f32 %v404, %v1879
    %v1881 = vtanh.pop %v1880
    %v1882 = vsub.f32 1.0, %v1875
    %v1883 = vmul.f32 %v1882, %v1881
    %v1884 = vrot.slane %v1641, 6
    %v1886 = vmul.f32 %v1875, %v1884
    %v1887 = vadd.f32 %v1883, %v1886
    %1888 = vst.msk [vmem:[#allocation14 + $0x8] sm:$0xc] %vm908, %v1887
    %v1890 = vrot.slane %v1887, 2
    %v1891 = vsel %vm153, %v1890, 0
    %1893 = vmatprep.subr.mxu0 0.0
    %1894 = vmatpush1.msra.mxu0 %v407
    %1895 = vmatprep.subr.mxu0 0.0
    %1896 = vmatpush1.msra.mxu0 %v408
    %1897 = vmatprep.subr.mxu0 0.0
    %1898 = vmatpush1.msra.mxu0 %v409
    %1899 = vmatprep.subr.mxu0 0.0
    %1900 = vmatpush1.msra.mxu0 %v410
    %1901 = vmatprep.subr.mxu0 0.0
    %1902 = vmatpush1.msra.mxu0 0.0
    %1903 = vmatprep.subr.mxu0 0.0
    %1904 = vmatpush1.msra.mxu0 0.0
    %1905 = vmatprep.subr.mxu0 0.0
    %1906 = vmatpush1.msra.mxu0 0.0
    %1907 = vmatprep.subr.mxu0 0.0
    %1908 = vmatpush1.msra.mxu0 0.0
    %1909 = vmatprep.subr.mxu0 0.0
    %1910 = vmatpush1.msra.mxu0 0.0
    %1911 = vmatprep.subr.mxu0 0.0
    %1912 = vmatpush1.msra.mxu0 0.0
    %1913 = vmatprep.subr.mxu0 0.0
    %1914 = vmatpush1.msra.mxu0 0.0
    %1915 = vmatprep.subr.mxu0 0.0
    %1916 = vmatpush1.msra.mxu0 0.0
    %1917 = vmatprep.subr.mxu0 0.0
    %1918 = vmatpush1.msra.mxu0 0.0
    %1919 = vmatprep.subr.mxu0 0.0
    %1920 = vmatpush1.msra.mxu0 0.0
    %1921 = vmatprep.subr.mxu0 0.0
    %1922 = vmatpush1.msra.mxu0 0.0
    %1923 = vmatprep.subr.mxu0 0.0
    %1924 = vmatpush1.msra.mxu0 0.0
    %1925 = vmatprep.subr.mxu0 0.0
    %1926 = vmatpush1.msra.mxu0 0.0
    %1927 = vmatprep.subr.mxu0 0.0
    %1928 = vmatpush1.msra.mxu0 0.0
    %1929 = vmatprep.subr.mxu0 0.0
    %1930 = vmatpush1.msra.mxu0 0.0
    %1931 = vmatprep.subr.mxu0 0.0
    %1932 = vmatpush1.msra.mxu0 0.0
    %1933 = vmatprep.subr.mxu0 0.0
    %1934 = vmatpush1.msra.mxu0 0.0
    %1935 = vmatprep.subr.mxu0 0.0
    %1936 = vmatpush1.msra.mxu0 0.0
    %1937 = vmatprep.subr.mxu0 0.0
    %1938 = vmatpush1.msra.mxu0 0.0
    %1939 = vmatprep.subr.mxu0 0.0
    %1940 = vmatpush1.msra.mxu0 0.0
    %1941 = vmatprep.subr.mxu0 0.0
    %1942 = vmatpush1.msra.mxu0 0.0
    %1943 = vmatprep.subr.mxu0 0.0
    %1944 = vmatpush1.msra.mxu0 0.0
    %1945 = vmatprep.subr.mxu0 0.0
    %1946 = vmatpush1.msra.mxu0 0.0
    %1947 = vmatprep.subr.mxu0 0.0
    %1948 = vmatpush1.msra.mxu0 0.0
    %1949 = vmatprep.subr.mxu0 0.0
    %1950 = vmatpush1.msra.mxu0 0.0
    %1951 = vmatprep.subr.mxu0 0.0
    %1952 = vmatpush1.msra.mxu0 0.0
    %1953 = vmatprep.subr.mxu0 0.0
    %1954 = vmatpush1.msra.mxu0 0.0
    %1955 = vmatprep.subr.mxu0 0.0
    %1956 = vmatpush1.msra.mxu0 0.0
    %1957 = vmatprep.mubr.f32.mxu0 0.0
    %1958 = vmatmul.mubr.f32.gmra.mrb[0].mxu0 %v1891
    %v1959 = vpop.f32.mrb[0].mxu0
    %v1960 = vadd.f32 0.0, %v1959
    %v1961 = vpop.f32.mrb[0].mxu0
    %1962 = vdwg.mxu0
    %1963 = vmatprep.subr.mxu0 0.0
    %1964 = vmatpush1.msra.mxu0 %v411
    %1965 = vmatprep.subr.mxu0 0.0
    %1966 = vmatpush1.msra.mxu0 %v412
    %1967 = vmatprep.subr.mxu0 0.0
    %1968 = vmatpush1.msra.mxu0 %v413
    %1969 = vmatprep.subr.mxu0 0.0
    %1970 = vmatpush1.msra.mxu0 %v414
    %1971 = vmatprep.subr.mxu0 0.0
    %1972 = vmatpush1.msra.mxu0 0.0
    %1973 = vmatprep.subr.mxu0 0.0
    %1974 = vmatpush1.msra.mxu0 0.0
    %1975 = vmatprep.subr.mxu0 0.0
    %1976 = vmatpush1.msra.mxu0 0.0
    %1977 = vmatprep.subr.mxu0 0.0
    %1978 = vmatpush1.msra.mxu0 0.0
    %1979 = vmatprep.subr.mxu0 0.0
    %1980 = vmatpush1.msra.mxu0 0.0
    %1981 = vmatprep.subr.mxu0 0.0
    %1982 = vmatpush1.msra.mxu0 0.0
    %1983 = vmatprep.subr.mxu0 0.0
    %1984 = vmatpush1.msra.mxu0 0.0
    %1985 = vmatprep.subr.mxu0 0.0
    %1986 = vmatpush1.msra.mxu0 0.0
    %1987 = vmatprep.subr.mxu0 0.0
    %1988 = vmatpush1.msra.mxu0 0.0
    %1989 = vmatprep.subr.mxu0 0.0
    %1990 = vmatpush1.msra.mxu0 0.0
    %1991 = vmatprep.subr.mxu0 0.0
    %1992 = vmatpush1.msra.mxu0 0.0
    %1993 = vmatprep.subr.mxu0 0.0
    %1994 = vmatpush1.msra.mxu0 0.0
    %1995 = vmatprep.subr.mxu0 0.0
    %1996 = vmatpush1.msra.mxu0 0.0
    %1997 = vmatprep.subr.mxu0 0.0
    %1998 = vmatpush1.msra.mxu0 0.0
    %1999 = vmatprep.subr.mxu0 0.0
    %2000 = vmatpush1.msra.mxu0 0.0
    %2001 = vmatprep.subr.mxu0 0.0
    %2002 = vmatpush1.msra.mxu0 0.0
    %2003 = vmatprep.subr.mxu0 0.0
    %2004 = vmatpush1.msra.mxu0 0.0
    %2005 = vmatprep.subr.mxu0 0.0
    %2006 = vmatpush1.msra.mxu0 0.0
    %2007 = vmatprep.subr.mxu0 0.0
    %2008 = vmatpush1.msra.mxu0 0.0
    %2009 = vmatprep.subr.mxu0 0.0
    %2010 = vmatpush1.msra.mxu0 0.0
    %2011 = vmatprep.subr.mxu0 0.0
    %2012 = vmatpush1.msra.mxu0 0.0
    %2013 = vmatprep.subr.mxu0 0.0
    %2014 = vmatpush1.msra.mxu0 0.0
    %2015 = vmatprep.subr.mxu0 0.0
    %2016 = vmatpush1.msra.mxu0 0.0
    %2017 = vmatprep.subr.mxu0 0.0
    %2018 = vmatpush1.msra.mxu0 0.0
    %2019 = vmatprep.subr.mxu0 0.0
    %2020 = vmatpush1.msra.mxu0 0.0
    %2021 = vmatprep.subr.mxu0 0.0
    %2022 = vmatpush1.msra.mxu0 0.0
    %2023 = vmatprep.subr.mxu0 0.0
    %2024 = vmatpush1.msra.mxu0 0.0
    %2025 = vmatprep.subr.mxu0 0.0
    %2026 = vmatpush1.msra.mxu0 0.0
    %2027 = vmatprep.mubr.f32.mxu0 0.0
    %2028 = vmatmul.mubr.f32.gmra.mrb[0].mxu0 %v1891
    %v2029 = vpop.f32.mrb[0].mxu0
    %v2030 = vadd.f32 0.0, %v2029
    %v2031 = vpop.f32.mrb[0].mxu0
    %2032 = vdwg.mxu0
    %2033 = vmatprep.subr.mxu0 0.0
    %2034 = vmatpush1.msra.mxu0 %v415
    %2035 = vmatprep.subr.mxu0 0.0
    %2036 = vmatpush1.msra.mxu0 %v416
    %2037 = vmatprep.subr.mxu0 0.0
    %2038 = vmatpush1.msra.mxu0 %v417
    %2039 = vmatprep.subr.mxu0 0.0
    %2040 = vmatpush1.msra.mxu0 %v418
    %2041 = vmatprep.subr.mxu0 0.0
    %2042 = vmatpush1.msra.mxu0 0.0
    %2043 = vmatprep.subr.mxu0 0.0
    %2044 = vmatpush1.msra.mxu0 0.0
    %2045 = vmatprep.subr.mxu0 0.0
    %2046 = vmatpush1.msra.mxu0 0.0
    %2047 = vmatprep.subr.mxu0 0.0
    %2048 = vmatpush1.msra.mxu0 0.0
    %2049 = vmatprep.subr.mxu0 0.0
    %2050 = vmatpush1.msra.mxu0 0.0
    %2051 = vmatprep.subr.mxu0 0.0
    %2052 = vmatpush1.msra.mxu0 0.0
    %2053 = vmatprep.subr.mxu0 0.0
    %2054 = vmatpush1.msra.mxu0 0.0
    %2055 = vmatprep.subr.mxu0 0.0
    %2056 = vmatpush1.msra.mxu0 0.0
    %2057 = vmatprep.subr.mxu0 0.0
    %2058 = vmatpush1.msra.mxu0 0.0
    %2059 = vmatprep.subr.mxu0 0.0
    %2060 = vmatpush1.msra.mxu0 0.0
    %2061 = vmatprep.subr.mxu0 0.0
    %2062 = vmatpush1.msra.mxu0 0.0
    %2063 = vmatprep.subr.mxu0 0.0
    %2064 = vmatpush1.msra.mxu0 0.0
    %2065 = vmatprep.subr.mxu0 0.0
    %2066 = vmatpush1.msra.mxu0 0.0
    %2067 = vmatprep.subr.mxu0 0.0
    %2068 = vmatpush1.msra.mxu0 0.0
    %2069 = vmatprep.subr.mxu0 0.0
    %2070 = vmatpush1.msra.mxu0 0.0
    %2071 = vmatprep.subr.mxu0 0.0
    %2072 = vmatpush1.msra.mxu0 0.0
    %2073 = vmatprep.subr.mxu0 0.0
    %2074 = vmatpush1.msra.mxu0 0.0
    %2075 = vmatprep.subr.mxu0 0.0
    %2076 = vmatpush1.msra.mxu0 0.0
    %2077 = vmatprep.subr.mxu0 0.0
    %2078 = vmatpush1.msra.mxu0 0.0
    %2079 = vmatprep.subr.mxu0 0.0
    %2080 = vmatpush1.msra.mxu0 0.0
    %2081 = vmatprep.subr.mxu0 0.0
    %2082 = vmatpush1.msra.mxu0 0.0
    %2083 = vmatprep.subr.mxu0 0.0
    %2084 = vmatpush1.msra.mxu0 0.0
    %2085 = vmatprep.subr.mxu0 0.0
    %2086 = vmatpush1.msra.mxu0 0.0
    %2087 = vmatprep.subr.mxu0 0.0
    %2088 = vmatpush1.msra.mxu0 0.0
    %2089 = vmatprep.subr.mxu0 0.0
    %2090 = vmatpush1.msra.mxu0 0.0
    %2091 = vmatprep.subr.mxu0 0.0
    %2092 = vmatpush1.msra.mxu0 0.0
    %2093 = vmatprep.subr.mxu0 0.0
    %2094 = vmatpush1.msra.mxu0 0.0
    %2095 = vmatprep.subr.mxu0 0.0
    %2096 = vmatpush1.msra.mxu0 0.0
    %2097 = vmatprep.mubr.f32.mxu0 0.0
    %2098 = vmatmul.mubr.f32.gmra.mrb[0].mxu0 %v1891
    %v2099 = vpop.f32.mrb[0].mxu0
    %v2100 = vadd.f32 %v568, %v2099
    %v2101 = vpop.f32.mrb[0].mxu0
    %2102 = vdwg.mxu0
    %v2104 = vrot.slane %v1960, 4
    %v2106 = vadd.f32 %v232, %v2104
    %v2107 = vxor.u32 %v2106, 2147483648
    %v2108 = vmul.f32 %v2107, 1.442695
    %v2109 = vpow.pop %v2108
    %v2110 = vadd.f32 %v2109, 1.0
    %v2111 = vrcp.pop %v2110
    %v2112 = vmul.f32 1.0, %v2111
    %v2114 = vrot.slane %v2030, 4
    %v2116 = vadd.f32 %v318, %v2114
    %v2117 = vxor.u32 %v2116, 2147483648
    %v2118 = vmul.f32 %v2117, 1.442695
    %v2119 = vpow.pop %v2118
    %v2120 = vadd.f32 %v2119, 1.0
    %v2121 = vrcp.pop %v2120
    %v2122 = vmul.f32 1.0, %v2121
    %v2124 = vrot.slane %v2100, 4
    %v2126 = vmul.f32 %v2112, %v2124
    %v2127 = vadd.f32 %v404, %v2126
    %v2128 = vtanh.pop %v2127
    %v2129 = vsub.f32 1.0, %v2122
    %v2130 = vmul.f32 %v2129, %v2128
    %v2131 = vrot.slane %v1887, 6
    %v2133 = vmul.f32 %v2122, %v2131
    %v2134 = vadd.f32 %v2130, %v2133
    %2135 = vst.msk [vmem:[#allocation14 + $0x8] sm:$0x30] %vm1156, %v2134
    %v2137 = vrot.slane %v2134, 4
    %v2138 = vsel %vm153, %v2137, 0
    %2140 = vmatprep.subr.mxu0 0.0
    %2141 = vmatpush1.msra.mxu0 %v407
    %2142 = vmatprep.subr.mxu0 0.0
    %2143 = vmatpush1.msra.mxu0 %v408
    %2144 = vmatprep.subr.mxu0 0.0
    %2145 = vmatpush1.msra.mxu0 %v409
    %2146 = vmatprep.subr.mxu0 0.0
    %2147 = vmatpush1.msra.mxu0 %v410
    %2148 = vmatprep.subr.mxu0 0.0
    %2149 = vmatpush1.msra.mxu0 0.0
    %2150 = vmatprep.subr.mxu0 0.0
    %2151 = vmatpush1.msra.mxu0 0.0
    %2152 = vmatprep.subr.mxu0 0.0
    %2153 = vmatpush1.msra.mxu0 0.0
    %2154 = vmatprep.subr.mxu0 0.0
    %2155 = vmatpush1.msra.mxu0 0.0
    %2156 = vmatprep.subr.mxu0 0.0
    %2157 = vmatpush1.msra.mxu0 0.0
    %2158 = vmatprep.subr.mxu0 0.0
    %2159 = vmatpush1.msra.mxu0 0.0
    %2160 = vmatprep.subr.mxu0 0.0
    %2161 = vmatpush1.msra.mxu0 0.0
    %2162 = vmatprep.subr.mxu0 0.0
    %2163 = vmatpush1.msra.mxu0 0.0
    %2164 = vmatprep.subr.mxu0 0.0
    %2165 = vmatpush1.msra.mxu0 0.0
    %2166 = vmatprep.subr.mxu0 0.0
    %2167 = vmatpush1.msra.mxu0 0.0
    %2168 = vmatprep.subr.mxu0 0.0
    %2169 = vmatpush1.msra.mxu0 0.0
    %2170 = vmatprep.subr.mxu0 0.0
    %2171 = vmatpush1.msra.mxu0 0.0
    %2172 = vmatprep.subr.mxu0 0.0
    %2173 = vmatpush1.msra.mxu0 0.0
    %2174 = vmatprep.subr.mxu0 0.0
    %2175 = vmatpush1.msra.mxu0 0.0
    %2176 = vmatprep.subr.mxu0 0.0
    %2177 = vmatpush1.msra.mxu0 0.0
    %2178 = vmatprep.subr.mxu0 0.0
    %2179 = vmatpush1.msra.mxu0 0.0
    %2180 = vmatprep.subr.mxu0 0.0
    %2181 = vmatpush1.msra.mxu0 0.0
    %2182 = vmatprep.subr.mxu0 0.0
    %2183 = vmatpush1.msra.mxu0 0.0
    %2184 = vmatprep.subr.mxu0 0.0
    %2185 = vmatpush1.msra.mxu0 0.0
    %2186 = vmatprep.subr.mxu0 0.0
    %2187 = vmatpush1.msra.mxu0 0.0
    %2188 = vmatprep.subr.mxu0 0.0
    %2189 = vmatpush1.msra.mxu0 0.0
    %2190 = vmatprep.subr.mxu0 0.0
    %2191 = vmatpush1.msra.mxu0 0.0
    %2192 = vmatprep.subr.mxu0 0.0
    %2193 = vmatpush1.msra.mxu0 0.0
    %2194 = vmatprep.subr.mxu0 0.0
    %2195 = vmatpush1.msra.mxu0 0.0
    %2196 = vmatprep.subr.mxu0 0.0
    %2197 = vmatpush1.msra.mxu0 0.0
    %2198 = vmatprep.subr.mxu0 0.0
    %2199 = vmatpush1.msra.mxu0 0.0
    %2200 = vmatprep.subr.mxu0 0.0
    %2201 = vmatpush1.msra.mxu0 0.0
    %2202 = vmatprep.subr.mxu0 0.0
    %2203 = vmatpush1.msra.mxu0 0.0
    %2204 = vmatprep.mubr.f32.mxu0 0.0
    %2205 = vmatmul.mubr.f32.gmra.mrb[0].mxu0 %v2138
    %v2206 = vpop.f32.mrb[0].mxu0
    %v2207 = vadd.f32 0.0, %v2206
    %v2208 = vpop.f32.mrb[0].mxu0
    %2209 = vdwg.mxu0
    %2210 = vmatprep.subr.mxu0 0.0
    %2211 = vmatpush1.msra.mxu0 %v411
    %2212 = vmatprep.subr.mxu0 0.0
    %2213 = vmatpush1.msra.mxu0 %v412
    %2214 = vmatprep.subr.mxu0 0.0
    %2215 = vmatpush1.msra.mxu0 %v413
    %2216 = vmatprep.subr.mxu0 0.0
    %2217 = vmatpush1.msra.mxu0 %v414
    %2218 = vmatprep.subr.mxu0 0.0
    %2219 = vmatpush1.msra.mxu0 0.0
    %2220 = vmatprep.subr.mxu0 0.0
    %2221 = vmatpush1.msra.mxu0 0.0
    %2222 = vmatprep.subr.mxu0 0.0
    %2223 = vmatpush1.msra.mxu0 0.0
    %2224 = vmatprep.subr.mxu0 0.0
    %2225 = vmatpush1.msra.mxu0 0.0
    %2226 = vmatprep.subr.mxu0 0.0
    %2227 = vmatpush1.msra.mxu0 0.0
    %2228 = vmatprep.subr.mxu0 0.0
    %2229 = vmatpush1.msra.mxu0 0.0
    %2230 = vmatprep.subr.mxu0 0.0
    %2231 = vmatpush1.msra.mxu0 0.0
    %2232 = vmatprep.subr.mxu0 0.0
    %2233 = vmatpush1.msra.mxu0 0.0
    %2234 = vmatprep.subr.mxu0 0.0
    %2235 = vmatpush1.msra.mxu0 0.0
    %2236 = vmatprep.subr.mxu0 0.0
    %2237 = vmatpush1.msra.mxu0 0.0
    %2238 = vmatprep.subr.mxu0 0.0
    %2239 = vmatpush1.msra.mxu0 0.0
    %2240 = vmatprep.subr.mxu0 0.0
    %2241 = vmatpush1.msra.mxu0 0.0
    %2242 = vmatprep.subr.mxu0 0.0
    %2243 = vmatpush1.msra.mxu0 0.0
    %2244 = vmatprep.subr.mxu0 0.0
    %2245 = vmatpush1.msra.mxu0 0.0
    %2246 = vmatprep.subr.mxu0 0.0
    %2247 = vmatpush1.msra.mxu0 0.0
    %2248 = vmatprep.subr.mxu0 0.0
    %2249 = vmatpush1.msra.mxu0 0.0
    %2250 = vmatprep.subr.mxu0 0.0
    %2251 = vmatpush1.msra.mxu0 0.0
    %2252 = vmatprep.subr.mxu0 0.0
    %2253 = vmatpush1.msra.mxu0 0.0
    %2254 = vmatprep.subr.mxu0 0.0
    %2255 = vmatpush1.msra.mxu0 0.0
    %2256 = vmatprep.subr.mxu0 0.0
    %2257 = vmatpush1.msra.mxu0 0.0
    %2258 = vmatprep.subr.mxu0 0.0
    %2259 = vmatpush1.msra.mxu0 0.0
    %2260 = vmatprep.subr.mxu0 0.0
    %2261 = vmatpush1.msra.mxu0 0.0
    %2262 = vmatprep.subr.mxu0 0.0
    %2263 = vmatpush1.msra.mxu0 0.0
    %2264 = vmatprep.subr.mxu0 0.0
    %2265 = vmatpush1.msra.mxu0 0.0
    %2266 = vmatprep.subr.mxu0 0.0
    %2267 = vmatpush1.msra.mxu0 0.0
    %2268 = vmatprep.subr.mxu0 0.0
    %2269 = vmatpush1.msra.mxu0 0.0
    %2270 = vmatprep.subr.mxu0 0.0
    %2271 = vmatpush1.msra.mxu0 0.0
    %2272 = vmatprep.subr.mxu0 0.0
    %2273 = vmatpush1.msra.mxu0 0.0
    %2274 = vmatprep.mubr.f32.mxu0 0.0
    %2275 = vmatmul.mubr.f32.gmra.mrb[0].mxu0 %v2138
    %v2276 = vpop.f32.mrb[0].mxu0
    %v2277 = vadd.f32 0.0, %v2276
    %v2278 = vpop.f32.mrb[0].mxu0
    %2279 = vdwg.mxu0
    %2280 = vmatprep.subr.mxu0 0.0
    %2281 = vmatpush1.msra.mxu0 %v415
    %2282 = vmatprep.subr.mxu0 0.0
    %2283 = vmatpush1.msra.mxu0 %v416
    %2284 = vmatprep.subr.mxu0 0.0
    %2285 = vmatpush1.msra.mxu0 %v417
    %2286 = vmatprep.subr.mxu0 0.0
    %2287 = vmatpush1.msra.mxu0 %v418
    %2288 = vmatprep.subr.mxu0 0.0
    %2289 = vmatpush1.msra.mxu0 0.0
    %2290 = vmatprep.subr.mxu0 0.0
    %2291 = vmatpush1.msra.mxu0 0.0
    %2292 = vmatprep.subr.mxu0 0.0
    %2293 = vmatpush1.msra.mxu0 0.0
    %2294 = vmatprep.subr.mxu0 0.0
    %2295 = vmatpush1.msra.mxu0 0.0
    %2296 = vmatprep.subr.mxu0 0.0
    %2297 = vmatpush1.msra.mxu0 0.0
    %2298 = vmatprep.subr.mxu0 0.0
    %2299 = vmatpush1.msra.mxu0 0.0
    %2300 = vmatprep.subr.mxu0 0.0
    %2301 = vmatpush1.msra.mxu0 0.0
    %2302 = vmatprep.subr.mxu0 0.0
    %2303 = vmatpush1.msra.mxu0 0.0
    %2304 = vmatprep.subr.mxu0 0.0
    %2305 = vmatpush1.msra.mxu0 0.0
    %2306 = vmatprep.subr.mxu0 0.0
    %2307 = vmatpush1.msra.mxu0 0.0
    %2308 = vmatprep.subr.mxu0 0.0
    %2309 = vmatpush1.msra.mxu0 0.0
    %2310 = vmatprep.subr.mxu0 0.0
    %2311 = vmatpush1.msra.mxu0 0.0
    %2312 = vmatprep.subr.mxu0 0.0
    %2313 = vmatpush1.msra.mxu0 0.0
    %2314 = vmatprep.subr.mxu0 0.0
    %2315 = vmatpush1.msra.mxu0 0.0
    %2316 = vmatprep.subr.mxu0 0.0
    %2317 = vmatpush1.msra.mxu0 0.0
    %2318 = vmatprep.subr.mxu0 0.0
    %2319 = vmatpush1.msra.mxu0 0.0
    %2320 = vmatprep.subr.mxu0 0.0
    %2321 = vmatpush1.msra.mxu0 0.0
    %2322 = vmatprep.subr.mxu0 0.0
    %2323 = vmatpush1.msra.mxu0 0.0
    %2324 = vmatprep.subr.mxu0 0.0
    %2325 = vmatpush1.msra.mxu0 0.0
    %2326 = vmatprep.subr.mxu0 0.0
    %2327 = vmatpush1.msra.mxu0 0.0
    %2328 = vmatprep.subr.mxu0 0.0
    %2329 = vmatpush1.msra.mxu0 0.0
    %2330 = vmatprep.subr.mxu0 0.0
    %2331 = vmatpush1.msra.mxu0 0.0
    %2332 = vmatprep.subr.mxu0 0.0
    %2333 = vmatpush1.msra.mxu0 0.0
    %2334 = vmatprep.subr.mxu0 0.0
    %2335 = vmatpush1.msra.mxu0 0.0
    %2336 = vmatprep.subr.mxu0 0.0
    %2337 = vmatpush1.msra.mxu0 0.0
    %2338 = vmatprep.subr.mxu0 0.0
    %2339 = vmatpush1.msra.mxu0 0.0
    %2340 = vmatprep.subr.mxu0 0.0
    %2341 = vmatpush1.msra.mxu0 0.0
    %2342 = vmatprep.subr.mxu0 0.0
    %2343 = vmatpush1.msra.mxu0 0.0
    %2344 = vmatprep.mubr.f32.mxu0 0.0
    %2345 = vmatmul.mubr.f32.gmra.mrb[0].mxu0 %v2138
    %v2346 = vpop.f32.mrb[0].mxu0
    %v2347 = vadd.f32 %v568, %v2346
    %v2348 = vpop.f32.mrb[0].mxu0
    %2349 = vdwg.mxu0
    %v2351 = vrot.slane %v2207, 2
    %v2353 = vadd.f32 %v232, %v2351
    %v2354 = vxor.u32 %v2353, 2147483648
    %v2355 = vmul.f32 %v2354, 1.442695
    %v2356 = vpow.pop %v2355
    %v2357 = vadd.f32 %v2356, 1.0
    %v2358 = vrcp.pop %v2357
    %v2359 = vmul.f32 1.0, %v2358
    %v2361 = vrot.slane %v2277, 2
    %v2363 = vadd.f32 %v318, %v2361
    %v2364 = vxor.u32 %v2363, 2147483648
    %v2365 = vmul.f32 %v2364, 1.442695
    %v2366 = vpow.pop %v2365
    %v2367 = vadd.f32 %v2366, 1.0
    %v2368 = vrcp.pop %v2367
    %v2369 = vmul.f32 1.0, %v2368
    %v2371 = vrot.slane %v2347, 2
    %v2373 = vmul.f32 %v2359, %v2371
    %v2374 = vadd.f32 %v404, %v2373
    %v2375 = vtanh.pop %v2374
    %v2376 = vsub.f32 1.0, %v2369
    %v2377 = vmul.f32 %v2376, %v2375
    %v2378 = vrot.slane %v2134, 6
    %v2380 = vmul.f32 %v2369, %v2378
    %v2381 = vadd.f32 %v2377, %v2380
    %2382 = vst.msk [vmem:[#allocation14 + $0x8] sm:$0xc0] %vm1404, %v2381
    %2383 = vst.msk [vmem:[#allocation15 - $0x6] sm:$0xc0] %vm1404, %v2381
    // Predicated region
    $region78: #{tpu_custom_call.1} parent=1 // pred_check
      _
    $region79: #{tpu_custom_call.1} parent=1 // pred_check_branch
      %2385 = sbr.rel (0) target = $region81
    $region80: #{tpu_custom_call.1} parent=1 // pred_region
      %s2387 = ssub.s32 256, 256
      %2388 = vsyncadd [#allocation4], %s2387
      %s2389 = sshll.u32 [#allocation14], 4
      %s2390 = int_to_ptr.vmem [resolvable:$true] %s2389
      %2395 = dma.vmem_to_hbm [thread:$0]  %s2390, 256, %s12, [#allocation4], 128, 128, 8
    $region81: #{tpu_custom_call.1} parent=1 // pred_fallthru
      _
    // Predicated region
    $region82: #{tpu_custom_call.1} parent=1 // pred_check
      _
    $region83: #{tpu_custom_call.1} parent=1 // pred_check_branch
      %2397 = sbr.rel (0) target = $region85
    $region84: #{tpu_custom_call.1} parent=1 // pred_region
      %s2399 = ssub.s32 32, 32
      %2400 = vsyncadd [#allocation16], %s2399
      %s2402 = sshll.u32 [#allocation15], 4
      %s2403 = int_to_ptr.vmem [resolvable:$true] %s2402
      %2405 = dma.vmem_to_hbm [thread:$0]  %s2403, 32, %s13, [#allocation16]
    $region85: #{tpu_custom_call.1} parent=1 // pred_fallthru
      _
    // Predicated region
    $region86: #{tpu_custom_call.1} parent=1 // pred_check
      _
    $region87: #{tpu_custom_call.1} parent=1 // pred_check_branch
      %2407 = sbr.rel (0) target = $region89
    $region88: #{tpu_custom_call.1} parent=1 // pred_region
      %2408 = dma.done [#allocation4], 256
    $region89: #{tpu_custom_call.1} parent=1 // pred_fallthru
      _
    // Predicated region
    $region90: #{tpu_custom_call.1} parent=1 // pred_check
      _
    $region91: #{tpu_custom_call.1} parent=1 // pred_check_branch
      %2410 = sbr.rel (0) target = $region93
    $region92: #{tpu_custom_call.1} parent=1 // pred_region
      %2411 = dma.done [#allocation16], 32
    $region93: #{tpu_custom_call.1} parent=1 // pred_fallthru
      _
    %2412 = vsyncpa [#allocation3], 1
    %2413 = vsyncpa [#allocation6], 1
    %2414 = vsyncpa [#allocation9], 1
    %2415 = vsyncpa [#allocation12], 1
    %2416 = vsyncpa [#allocation4], 1
    %2417 = vsyncpa [#allocation16], 1

</llo_original>
